<compile_context>
chip_gen: v5e
topology: v5e:2x2
jax: 0.10.0
libtpu: 0.0.40
codegen_flags: <defaults>
</compile_context>

<pallas_src>
import jax
import jax.numpy as jnp
from jax.experimental import pallas as pl
from jax.experimental.pallas import tpu as pltpu

PAD = 3   # half-width of the merged 7x7 kernel
KS = 7    # merged kernel size
HIGH = jax.lax.Precision.HIGHEST  # only used by the pure-JAX reference


def _sigmoid(x):
    # sigmoid(x) = 0.5 * tanh(x/2) + 0.5 : numerically robust, maps to the EUP.
    return 0.5 * jnp.tanh(0.5 * x) + 0.5


def msaa_forward(x_fused_nchw, p):
    """x_fused_nchw: (N, Cin, H, W) f32 -> (N, Cout, H, W) f32."""
    N, Cin, H, W = x_fused_nchw.shape
    dim = p['wd'].shape[1]
    Cout = p['wup'].shape[1]
    HW = H * W
    padw = PAD * W + PAD          # row-pad length so every (dy,dx) slice is in bounds

    # ---------------- trace-time parameter prep (channels-first layout) ----------------
    # Merge 3x3 + 5x5 + 7x7 into one 7x7 kernel (exact: shared input, 'same' zero pad).
    w_m = (p['w7']
           + jnp.pad(p['w5'], ((1, 1), (1, 1), (0, 0), (0, 0)))
           + jnp.pad(p['w3'], ((2, 2), (2, 2), (0, 0), (0, 0))))          # (7,7,dim,dim) HWIO
    # Kernel-side im2col K ordering is (dx, dy, cin): pack weights as (cout, dx, dy, cin).
    wc_t = jnp.transpose(w_m, (3, 1, 0, 2)).reshape(dim, KS * KS * dim).astype(jnp.bfloat16)
    bc_t = (p['b3'] + p['b5'] + p['b7']).reshape(dim, 1)                  # f32

    wsa_hwio = p['wsa_flat'].reshape(KS, KS, 2, 1)
    wsa_t = jnp.transpose(wsa_hwio, (3, 1, 0, 2)).reshape(1, KS * KS * 2).astype(jnp.bfloat16)

    wd_t = p['wd'].T.astype(jnp.bfloat16)        # (dim, Cin)
    bd_t = p['bd'].reshape(dim, 1)               # f32
    wfc1_t = p['wfc1'].T                         # (dim_r, dim) f32 (tiny MLP stays f32)
    wfc2_t = p['wfc2'].T                         # (dim, dim_r) f32
    wup_t = p['wup'].T.astype(jnp.bfloat16)      # (Cout, dim)
    bup_t = p['bup'].reshape(Cout, 1)            # f32

    # Per-dx column-validity masks for the flat-HW shifted slices (1 = valid column).
    col = jnp.arange(HW, dtype=jnp.int32) % W
    masks = jnp.stack(
        [((col >= PAD - dx) & (col < W + PAD - dx)).astype(jnp.bfloat16) for dx in range(KS)],
        axis=0)                                  # (7, HW)

    x_flat = x_fused_nchw.reshape(N, Cin, HW)

    def kernel(x_ref, m_ref, wd_ref, bd_ref, wc_ref, bc_ref,
               wfc1_ref, wfc2_ref, wsa_ref, wup_ref, bup_ref, o_ref):
        masks_v = m_ref[...]                                   # (7, HW) bf16
        x_bf = x_ref[0].astype(jnp.bfloat16)                   # (Cin, HW)

        # ---- down projection (1x1 conv): (dim,Cin)@(Cin,HW), f32 accumulate ----
        fused = (jnp.dot(wd_ref[...], x_bf, preferred_element_type=jnp.float32)
                 + bd_ref[...])                                # (dim, HW) f32

        # ---- channel attention: avg/max over HW, shared MLP run once on 2 columns ----
        pool = jnp.concatenate([jnp.mean(fused, axis=1, keepdims=True),
                                jnp.max(fused, axis=1, keepdims=True)], axis=1)   # (dim, 2)
        h = jnp.maximum(jnp.dot(wfc1_ref[...], pool,
                                preferred_element_type=jnp.float32), 0.0)         # (dim_r, 2)
        mlp = jnp.dot(wfc2_ref[...], h, preferred_element_type=jnp.float32)       # (dim, 2)
        ca = _sigmoid(mlp[:, 0:1] + mlp[:, 1:2])               # (dim, 1)
        fused_c = fused * ca                                   # (dim, HW)

        # ---- 7x7 'same' conv on channels-first flat-HW data ----
        # Row padding via one lane concat; column validity via per-dx mask;
        # accumulate 7 shift-group matmuls (K = 7*cin) -> no 49x patches tensor.
        def conv7(x_cf, w_val, cin, cout):
            xb = x_cf.astype(jnp.bfloat16)
            z = jnp.zeros((cin, padw), jnp.bfloat16)
            G = jnp.concatenate([z, xb, z], axis=1)            # (cin, HW + 2*padw)
            acc = jnp.zeros((cout, HW), jnp.float32)
            for dx in range(KS):
                m = masks_v[dx:dx + 1, :]                      # (1, HW)
                Pd = jnp.concatenate(
                    [G[:, dy * W + dx: dy * W + dx + HW] for dy in range(KS)],
                    axis=0) * m                                # (7*cin, HW) bf16
                wk = w_val[:, dx * KS * cin:(dx + 1) * KS * cin]   # (cout, 7*cin)
                acc = acc + jnp.dot(wk, Pd, preferred_element_type=jnp.float32)
            return acc

        s = conv7(fused, wc_ref[...], dim, dim) + bc_ref[...]  # (dim, HW) f32

        # ---- spatial attention: mean/max over channels, 7x7 conv (2->1), sigmoid ----
        sa_in = jnp.concatenate([jnp.mean(s, axis=0, keepdims=True),
                                 jnp.max(s, axis=0, keepdims=True)], axis=0)      # (2, HW)
        sa = _sigmoid(conv7(sa_in, wsa_ref[...], 2, 1))        # (1, HW)

        # ---- fuse + up projection (1x1 conv), lane-dense (Cout, HW) store ----
        pre_up = s * sa + fused_c                              # (dim, HW) f32
        o_ref[0] = (jnp.dot(wup_ref[...], pre_up.astype(jnp.bfloat16),
                            preferred_element_type=jnp.float32)
                    + bup_ref[...])                            # (Cout, HW)

    def full_spec(a):
        return pl.BlockSpec(a.shape, lambda b, nd=a.ndim: (0,) * nd)

    operands = (x_flat, masks, wd_t, bd_t, wc_t, bc_t,
                wfc1_t, wfc2_t, wsa_t, wup_t, bup_t)
    in_specs = ([pl.BlockSpec((1, Cin, HW), lambda b: (b, 0, 0))]
                + [full_spec(a) for a in operands[1:]])

    out_flat = pl.pallas_call(
        kernel,
        out_shape=jax.ShapeDtypeStruct((N, Cout, HW), jnp.float32),
        grid_spec=pltpu.PrefetchScalarGridSpec(
            num_scalar_prefetch=0,
            grid=(N,),
            in_specs=in_specs,
            out_specs=pl.BlockSpec((1, Cout, HW), lambda b: (b, 0, 0))),
        compiler_params=pltpu.CompilerParams(
            dimension_semantics=("parallel",)),    # batch images are independent
    )(*operands)

    return out_flat.reshape(N, Cout, H, W)


# ------------------------- pure-JAX reference (for checking) -------------------------
def _conv_nchw(x, w_hwio, b=None, pad=0):
    out = jax.lax.conv_general_dilated(
        x, w_hwio, window_strides=(1, 1),
        padding=[(pad, pad), (pad, pad)],
        dimension_numbers=('NCHW', 'HWIO', 'NCHW'),
        precision=HIGH)
    if b is not None:
        out = out + b.reshape(1, -1, 1, 1)
    return out


def msaa_ref(xf, p):
    f = _conv_nchw(xf, p['wd'].reshape(1, 1, *p['wd'].shape), p['bd'].reshape(-1))
    avg = jnp.mean(f, axis=(2, 3), keepdims=True)
    mx = jnp.max(f, axis=(2, 3), keepdims=True)

    def fc(v):
        h = jnp.maximum(jnp.einsum('ncij,cr->nrij', v, p['wfc1'], precision=HIGH), 0.0)
        return jnp.einsum('nrij,rc->ncij', h, p['wfc2'], precision=HIGH)

    ca = jax.nn.sigmoid(fc(avg) + fc(mx))
    f_c = f * ca
    s = (_conv_nchw(f, p['w3'], p['b3'].reshape(-1), 1)
         + _conv_nchw(f, p['w5'], p['b5'].reshape(-1), 2)
         + _conv_nchw(f, p['w7'], p['b7'].reshape(-1), 3))
    sa_in = jnp.concatenate([jnp.mean(s, 1, keepdims=True),
                             jnp.max(s, 1, keepdims=True)], axis=1)
    wsa = p['wsa_flat'].reshape(7, 7, 2, 1)
    sa = jax.nn.sigmoid(_conv_nchw(sa_in, wsa, None, 3))
    f_s = s * sa
    return _conv_nchw(f_s + f_c, p['wup'].reshape(1, 1, *p['wup'].shape),
                      p['bup'].reshape(-1))


if __name__ == "__main__":
    # Small config: 4 inputs of 8 channels each -> in_channels=32, out_channels=32,
    # factor=4 -> dim=8, channel-attn hidden dim_r=2, spatial 16x16, batch 2.
    N, C_each, H, W = 2, 8, 16, 16
    Cin = 4 * C_each
    Cout = 32
    dim = int(Cout // 4.0)
    dim_r = dim // 4

    key = jax.random.PRNGKey(0)
    ks = jax.random.split(key, 20)

    def rnd(k, shape, scale=0.1):
        return scale * jax.random.normal(k, shape, dtype=jnp.float32)

    # Deterministic synthetic parameters (no checkpoint loading).
    params = {
        'wd':  rnd(ks[0], (Cin, dim)),       'bd':  rnd(ks[1], (1, dim)),
        'w3':  rnd(ks[2], (3, 3, dim, dim)), 'b3':  rnd(ks[3], (1, dim)),
        'w5':  rnd(ks[4], (5, 5, dim, dim)), 'b5':  rnd(ks[5], (1, dim)),
        'w7':  rnd(ks[6], (7, 7, dim, dim)), 'b7':  rnd(ks[7], (1, dim)),
        'wfc1': rnd(ks[8], (dim, dim_r)),    'wfc2': rnd(ks[9], (dim_r, dim)),
        'wsa_flat': rnd(ks[10], (7 * 7 * 2,)),
        'wup': rnd(ks[11], (dim, Cout)),     'bup': rnd(ks[12], (1, Cout)),
    }

    # Inputs (NCHW like the PyTorch module), concatenated along channels.
    x1 = rnd(ks[13], (N, C_each, H, W), 1.0)
    x2 = rnd(ks[14], (N, C_each, H, W), 1.0)
    x3 = rnd(ks[15], (N, C_each, H, W), 1.0)
    x4 = rnd(ks[16], (N, C_each, H, W), 1.0)
    x_fused_nchw = jnp.concatenate([x1, x2, x3, x4], axis=1)          # (N, Cin, H, W)

    out = msaa_forward(x_fused_nchw, params)
    out = jax.block_until_ready(out)

    ref = jax.block_until_ready(msaa_ref(x_fused_nchw, params))
    max_diff = float(jnp.max(jnp.abs(out - ref)))
    assert out.shape == (N, Cout, H, W), out.shape
    # Kernel runs the matmuls with bf16 operands (f32 accumulation) while the
    # reference runs at HIGHEST precision; tolerance is bf16-class accuracy.
    # A tap-ordering / transpose bug would produce O(1) errors and still fail this.
    assert max_diff < 3e-2, f"mismatch vs reference: {max_diff}"

    print("KERNEL_OK")
</pallas_src>

<mosaic_0001>
module attributes {stable_mosaic.version = 11 : i64} {
  func.func @kernel(%arg0: i32, %arg1: memref<1x32x256xf32, #tpu.memory_space<vmem>>, %arg2: memref<7x256xbf16, #tpu.memory_space<vmem>>, %arg3: memref<8x32xbf16, #tpu.memory_space<vmem>>, %arg4: memref<8x1xf32, #tpu.memory_space<vmem>>, %arg5: memref<8x392xbf16, #tpu.memory_space<vmem>>, %arg6: memref<8x1xf32, #tpu.memory_space<vmem>>, %arg7: memref<2x8xf32, #tpu.memory_space<vmem>>, %arg8: memref<8x2xf32, #tpu.memory_space<vmem>>, %arg9: memref<1x98xbf16, #tpu.memory_space<vmem>>, %arg10: memref<32x8xbf16, #tpu.memory_space<vmem>>, %arg11: memref<32x1xf32, #tpu.memory_space<vmem>>, %arg12: memref<1x32x256xf32, #tpu.memory_space<vmem>>) attributes {dimension_semantics = [#tpu.dimension_semantics<parallel>], iteration_bounds = array<i64: 2>, scalar_prefetch = 0 : i64, scratch_operands = 0 : i64, tpu.core_type = #tpu.core_type<tc>, window_params = [{transform_indices = @transform_0, window_bounds = array<i64: 1, 32, 256>}, {pipeline_mode = #tpu.pipeline_mode<synchronous>, transform_indices = @transform_1, window_bounds = array<i64: 7, 256>}, {pipeline_mode = #tpu.pipeline_mode<synchronous>, transform_indices = @transform_2, window_bounds = array<i64: 8, 32>}, {pipeline_mode = #tpu.pipeline_mode<synchronous>, transform_indices = @transform_3, window_bounds = array<i64: 8, 1>}, {pipeline_mode = #tpu.pipeline_mode<synchronous>, transform_indices = @transform_4, window_bounds = array<i64: 8, 392>}, {pipeline_mode = #tpu.pipeline_mode<synchronous>, transform_indices = @transform_5, window_bounds = array<i64: 8, 1>}, {pipeline_mode = #tpu.pipeline_mode<synchronous>, transform_indices = @transform_6, window_bounds = array<i64: 2, 8>}, {pipeline_mode = #tpu.pipeline_mode<synchronous>, transform_indices = @transform_7, window_bounds = array<i64: 8, 2>}, {pipeline_mode = #tpu.pipeline_mode<synchronous>, transform_indices = @transform_8, window_bounds = array<i64: 1, 98>}, {pipeline_mode = #tpu.pipeline_mode<synchronous>, transform_indices = @transform_9, window_bounds = array<i64: 32, 8>}, {pipeline_mode = #tpu.pipeline_mode<synchronous>, transform_indices = @transform_10, window_bounds = array<i64: 32, 1>}, {transform_indices = @transform_11, window_bounds = array<i64: 1, 32, 256>}]} {
    %c0 = arith.constant 0 : index
    %c0_0 = arith.constant 0 : index
    %0 = vector.load %arg2[%c0, %c0_0] : memref<7x256xbf16, #tpu.memory_space<vmem>>, vector<7x256xbf16>
    %c0_1 = arith.constant 0 : index
    %c0_2 = arith.constant 0 : index
    %c0_3 = arith.constant 0 : index
    %1 = vector.load %arg1[%c0_1, %c0_2, %c0_3] : memref<1x32x256xf32, #tpu.memory_space<vmem>>, vector<1x32x256xf32>
    %2 = vector.shape_cast %1 : vector<1x32x256xf32> to vector<32x256xf32>
    %3 = arith.truncf %2 : vector<32x256xf32> to vector<32x256xbf16>
    %c0_4 = arith.constant 0 : index
    %c0_5 = arith.constant 0 : index
    %4 = vector.load %arg3[%c0_4, %c0_5] : memref<8x32xbf16, #tpu.memory_space<vmem>>, vector<8x32xbf16>
    %cst = arith.constant dense<0.000000e+00> : vector<8x256xf32>
    %5 = tpu.matmul %4, %3, %cst {dimension_numbers = #tpu.dot_dimension_numbers<[1], [0], [0], [1], [0, 0, 1, 1], [], []>} : vector<8x32xbf16>, vector<32x256xbf16>, vector<8x256xf32> -> vector<8x256xf32>
    %c0_6 = arith.constant 0 : index
    %c0_7 = arith.constant 0 : index
    %6 = vector.load %arg4[%c0_6, %c0_7] : memref<8x1xf32, #tpu.memory_space<vmem>>, vector<8x1xf32>
    %7 = vector.broadcast %6 : vector<8x1xf32> to vector<8x256xf32>
    %8 = arith.addf %5, %7 : vector<8x256xf32>
    %cst_8 = arith.constant dense<0.000000e+00> : vector<8xf32>
    %9 = vector.multi_reduction <add>, %8, %cst_8 [1] : vector<8x256xf32> to vector<8xf32>
    %10 = vector.shape_cast %9 : vector<8xf32> to vector<8x1xf32>
    %cst_9 = arith.constant 2.560000e+02 : f32
    %11 = vector.broadcast %cst_9 : f32 to vector<8x1xf32>
    %12 = arith.divf %10, %11 : vector<8x1xf32>
    %cst_10 = arith.constant dense<0xFF800000> : vector<8xf32>
    %13 = vector.multi_reduction <maximumf>, %8, %cst_10 [1] : vector<8x256xf32> to vector<8xf32>
    %14 = vector.shape_cast %13 : vector<8xf32> to vector<8x1xf32>
    %15 = tpu.concatenate %12, %14 in 1 : vector<8x1xf32>, vector<8x1xf32> -> vector<8x2xf32>
    %c0_11 = arith.constant 0 : index
    %c0_12 = arith.constant 0 : index
    %16 = vector.load %arg7[%c0_11, %c0_12] : memref<2x8xf32, #tpu.memory_space<vmem>>, vector<2x8xf32>
    %cst_13 = arith.constant dense<0.000000e+00> : vector<2x2xf32>
    %17 = tpu.matmul %16, %15, %cst_13 {dimension_numbers = #tpu.dot_dimension_numbers<[1], [0], [0], [1], [0, 0, 1, 1], [], []>} : vector<2x8xf32>, vector<8x2xf32>, vector<2x2xf32> -> vector<2x2xf32>
    %cst_14 = arith.constant 0.000000e+00 : f32
    %18 = vector.broadcast %cst_14 : f32 to vector<2x2xf32>
    %19 = arith.maximumf %17, %18 : vector<2x2xf32>
    %c0_15 = arith.constant 0 : index
    %c0_16 = arith.constant 0 : index
    %20 = vector.load %arg8[%c0_15, %c0_16] : memref<8x2xf32, #tpu.memory_space<vmem>>, vector<8x2xf32>
    %cst_17 = arith.constant dense<0.000000e+00> : vector<8x2xf32>
    %21 = tpu.matmul %20, %19, %cst_17 {dimension_numbers = #tpu.dot_dimension_numbers<[1], [0], [0], [1], [0, 0, 1, 1], [], []>} : vector<8x2xf32>, vector<2x2xf32>, vector<8x2xf32> -> vector<8x2xf32>
    %22 = vector.extract_strided_slice %21 {offsets = [0, 0], sizes = [8, 1], strides = [1, 1]} : vector<8x2xf32> to vector<8x1xf32>
    %23 = vector.extract_strided_slice %21 {offsets = [0, 1], sizes = [8, 1], strides = [1, 1]} : vector<8x2xf32> to vector<8x1xf32>
    %24 = arith.addf %22, %23 : vector<8x1xf32>
    %cst_18 = arith.constant 5.000000e-01 : f32
    %25 = vector.broadcast %cst_18 : f32 to vector<8x1xf32>
    %26 = arith.mulf %25, %24 : vector<8x1xf32>
    %27 = math.tanh %26 : vector<8x1xf32>
    %cst_19 = arith.constant 5.000000e-01 : f32
    %28 = vector.broadcast %cst_19 : f32 to vector<8x1xf32>
    %29 = arith.mulf %28, %27 : vector<8x1xf32>
    %cst_20 = arith.constant 5.000000e-01 : f32
    %30 = vector.broadcast %cst_20 : f32 to vector<8x1xf32>
    %31 = arith.addf %29, %30 : vector<8x1xf32>
    %32 = vector.broadcast %31 : vector<8x1xf32> to vector<8x256xf32>
    %33 = arith.mulf %8, %32 : vector<8x256xf32>
    %c0_21 = arith.constant 0 : index
    %c0_22 = arith.constant 0 : index
    %34 = vector.load %arg5[%c0_21, %c0_22] : memref<8x392xbf16, #tpu.memory_space<vmem>>, vector<8x392xbf16>
    %35 = arith.truncf %8 : vector<8x256xf32> to vector<8x256xbf16>
    %cst_23 = arith.constant 0.000000e+00 : bf16
    %36 = vector.broadcast %cst_23 : bf16 to vector<8x51xbf16>
    %37 = tpu.concatenate %36, %35, %36 in 1 : vector<8x51xbf16>, vector<8x256xbf16>, vector<8x51xbf16> -> vector<8x358xbf16>
    %cst_24 = arith.constant 0.000000e+00 : f32
    %38 = vector.broadcast %cst_24 : f32 to vector<8x256xf32>
    %39 = vector.extract_strided_slice %0 {offsets = [0, 0], sizes = [1, 256], strides = [1, 1]} : vector<7x256xbf16> to vector<1x256xbf16>
    %40 = vector.extract_strided_slice %37 {offsets = [0, 0], sizes = [8, 256], strides = [1, 1]} : vector<8x358xbf16> to vector<8x256xbf16>
    %41 = vector.extract_strided_slice %37 {offsets = [0, 16], sizes = [8, 256], strides = [1, 1]} : vector<8x358xbf16> to vector<8x256xbf16>
    %42 = vector.extract_strided_slice %37 {offsets = [0, 32], sizes = [8, 256], strides = [1, 1]} : vector<8x358xbf16> to vector<8x256xbf16>
    %43 = vector.extract_strided_slice %37 {offsets = [0, 48], sizes = [8, 256], strides = [1, 1]} : vector<8x358xbf16> to vector<8x256xbf16>
    %44 = vector.extract_strided_slice %37 {offsets = [0, 64], sizes = [8, 256], strides = [1, 1]} : vector<8x358xbf16> to vector<8x256xbf16>
    %45 = vector.extract_strided_slice %37 {offsets = [0, 80], sizes = [8, 256], strides = [1, 1]} : vector<8x358xbf16> to vector<8x256xbf16>
    %46 = vector.extract_strided_slice %37 {offsets = [0, 96], sizes = [8, 256], strides = [1, 1]} : vector<8x358xbf16> to vector<8x256xbf16>
    %47 = tpu.concatenate %40, %41, %42, %43, %44, %45, %46 in 0 : vector<8x256xbf16>, vector<8x256xbf16>, vector<8x256xbf16>, vector<8x256xbf16>, vector<8x256xbf16>, vector<8x256xbf16>, vector<8x256xbf16> -> vector<56x256xbf16>
    %48 = vector.broadcast %39 : vector<1x256xbf16> to vector<56x256xbf16>
    %49 = arith.mulf %47, %48 : vector<56x256xbf16>
    %50 = vector.extract_strided_slice %34 {offsets = [0, 0], sizes = [8, 56], strides = [1, 1]} : vector<8x392xbf16> to vector<8x56xbf16>
    %cst_25 = arith.constant dense<0.000000e+00> : vector<8x256xf32>
    %51 = tpu.matmul %50, %49, %cst_25 {dimension_numbers = #tpu.dot_dimension_numbers<[1], [0], [0], [1], [0, 0, 1, 1], [], []>} : vector<8x56xbf16>, vector<56x256xbf16>, vector<8x256xf32> -> vector<8x256xf32>
    %52 = arith.addf %38, %51 : vector<8x256xf32>
    %53 = vector.extract_strided_slice %0 {offsets = [1, 0], sizes = [1, 256], strides = [1, 1]} : vector<7x256xbf16> to vector<1x256xbf16>
    %54 = vector.extract_strided_slice %37 {offsets = [0, 1], sizes = [8, 256], strides = [1, 1]} : vector<8x358xbf16> to vector<8x256xbf16>
    %55 = vector.extract_strided_slice %37 {offsets = [0, 17], sizes = [8, 256], strides = [1, 1]} : vector<8x358xbf16> to vector<8x256xbf16>
    %56 = vector.extract_strided_slice %37 {offsets = [0, 33], sizes = [8, 256], strides = [1, 1]} : vector<8x358xbf16> to vector<8x256xbf16>
    %57 = vector.extract_strided_slice %37 {offsets = [0, 49], sizes = [8, 256], strides = [1, 1]} : vector<8x358xbf16> to vector<8x256xbf16>
    %58 = vector.extract_strided_slice %37 {offsets = [0, 65], sizes = [8, 256], strides = [1, 1]} : vector<8x358xbf16> to vector<8x256xbf16>
    %59 = vector.extract_strided_slice %37 {offsets = [0, 81], sizes = [8, 256], strides = [1, 1]} : vector<8x358xbf16> to vector<8x256xbf16>
    %60 = vector.extract_strided_slice %37 {offsets = [0, 97], sizes = [8, 256], strides = [1, 1]} : vector<8x358xbf16> to vector<8x256xbf16>
    %61 = tpu.concatenate %54, %55, %56, %57, %58, %59, %60 in 0 : vector<8x256xbf16>, vector<8x256xbf16>, vector<8x256xbf16>, vector<8x256xbf16>, vector<8x256xbf16>, vector<8x256xbf16>, vector<8x256xbf16> -> vector<56x256xbf16>
    %62 = vector.broadcast %53 : vector<1x256xbf16> to vector<56x256xbf16>
    %63 = arith.mulf %61, %62 : vector<56x256xbf16>
    %64 = vector.extract_strided_slice %34 {offsets = [0, 56], sizes = [8, 56], strides = [1, 1]} : vector<8x392xbf16> to vector<8x56xbf16>
    %cst_26 = arith.constant dense<0.000000e+00> : vector<8x256xf32>
    %65 = tpu.matmul %64, %63, %cst_26 {dimension_numbers = #tpu.dot_dimension_numbers<[1], [0], [0], [1], [0, 0, 1, 1], [], []>} : vector<8x56xbf16>, vector<56x256xbf16>, vector<8x256xf32> -> vector<8x256xf32>
    %66 = arith.addf %52, %65 : vector<8x256xf32>
    %67 = vector.extract_strided_slice %0 {offsets = [2, 0], sizes = [1, 256], strides = [1, 1]} : vector<7x256xbf16> to vector<1x256xbf16>
    %68 = vector.extract_strided_slice %37 {offsets = [0, 2], sizes = [8, 256], strides = [1, 1]} : vector<8x358xbf16> to vector<8x256xbf16>
    %69 = vector.extract_strided_slice %37 {offsets = [0, 18], sizes = [8, 256], strides = [1, 1]} : vector<8x358xbf16> to vector<8x256xbf16>
    %70 = vector.extract_strided_slice %37 {offsets = [0, 34], sizes = [8, 256], strides = [1, 1]} : vector<8x358xbf16> to vector<8x256xbf16>
    %71 = vector.extract_strided_slice %37 {offsets = [0, 50], sizes = [8, 256], strides = [1, 1]} : vector<8x358xbf16> to vector<8x256xbf16>
    %72 = vector.extract_strided_slice %37 {offsets = [0, 66], sizes = [8, 256], strides = [1, 1]} : vector<8x358xbf16> to vector<8x256xbf16>
    %73 = vector.extract_strided_slice %37 {offsets = [0, 82], sizes = [8, 256], strides = [1, 1]} : vector<8x358xbf16> to vector<8x256xbf16>
    %74 = vector.extract_strided_slice %37 {offsets = [0, 98], sizes = [8, 256], strides = [1, 1]} : vector<8x358xbf16> to vector<8x256xbf16>
    %75 = tpu.concatenate %68, %69, %70, %71, %72, %73, %74 in 0 : vector<8x256xbf16>, vector<8x256xbf16>, vector<8x256xbf16>, vector<8x256xbf16>, vector<8x256xbf16>, vector<8x256xbf16>, vector<8x256xbf16> -> vector<56x256xbf16>
    %76 = vector.broadcast %67 : vector<1x256xbf16> to vector<56x256xbf16>
    %77 = arith.mulf %75, %76 : vector<56x256xbf16>
    %78 = vector.extract_strided_slice %34 {offsets = [0, 112], sizes = [8, 56], strides = [1, 1]} : vector<8x392xbf16> to vector<8x56xbf16>
    %cst_27 = arith.constant dense<0.000000e+00> : vector<8x256xf32>
    %79 = tpu.matmul %78, %77, %cst_27 {dimension_numbers = #tpu.dot_dimension_numbers<[1], [0], [0], [1], [0, 0, 1, 1], [], []>} : vector<8x56xbf16>, vector<56x256xbf16>, vector<8x256xf32> -> vector<8x256xf32>
    %80 = arith.addf %66, %79 : vector<8x256xf32>
    %81 = vector.extract_strided_slice %0 {offsets = [3, 0], sizes = [1, 256], strides = [1, 1]} : vector<7x256xbf16> to vector<1x256xbf16>
    %82 = vector.extract_strided_slice %37 {offsets = [0, 3], sizes = [8, 256], strides = [1, 1]} : vector<8x358xbf16> to vector<8x256xbf16>
    %83 = vector.extract_strided_slice %37 {offsets = [0, 19], sizes = [8, 256], strides = [1, 1]} : vector<8x358xbf16> to vector<8x256xbf16>
    %84 = vector.extract_strided_slice %37 {offsets = [0, 35], sizes = [8, 256], strides = [1, 1]} : vector<8x358xbf16> to vector<8x256xbf16>
    %85 = vector.extract_strided_slice %37 {offsets = [0, 51], sizes = [8, 256], strides = [1, 1]} : vector<8x358xbf16> to vector<8x256xbf16>
    %86 = vector.extract_strided_slice %37 {offsets = [0, 67], sizes = [8, 256], strides = [1, 1]} : vector<8x358xbf16> to vector<8x256xbf16>
    %87 = vector.extract_strided_slice %37 {offsets = [0, 83], sizes = [8, 256], strides = [1, 1]} : vector<8x358xbf16> to vector<8x256xbf16>
    %88 = vector.extract_strided_slice %37 {offsets = [0, 99], sizes = [8, 256], strides = [1, 1]} : vector<8x358xbf16> to vector<8x256xbf16>
    %89 = tpu.concatenate %82, %83, %84, %85, %86, %87, %88 in 0 : vector<8x256xbf16>, vector<8x256xbf16>, vector<8x256xbf16>, vector<8x256xbf16>, vector<8x256xbf16>, vector<8x256xbf16>, vector<8x256xbf16> -> vector<56x256xbf16>
    %90 = vector.broadcast %81 : vector<1x256xbf16> to vector<56x256xbf16>
    %91 = arith.mulf %89, %90 : vector<56x256xbf16>
    %92 = vector.extract_strided_slice %34 {offsets = [0, 168], sizes = [8, 56], strides = [1, 1]} : vector<8x392xbf16> to vector<8x56xbf16>
    %cst_28 = arith.constant dense<0.000000e+00> : vector<8x256xf32>
    %93 = tpu.matmul %92, %91, %cst_28 {dimension_numbers = #tpu.dot_dimension_numbers<[1], [0], [0], [1], [0, 0, 1, 1], [], []>} : vector<8x56xbf16>, vector<56x256xbf16>, vector<8x256xf32> -> vector<8x256xf32>
    %94 = arith.addf %80, %93 : vector<8x256xf32>
    %95 = vector.extract_strided_slice %0 {offsets = [4, 0], sizes = [1, 256], strides = [1, 1]} : vector<7x256xbf16> to vector<1x256xbf16>
    %96 = vector.extract_strided_slice %37 {offsets = [0, 4], sizes = [8, 256], strides = [1, 1]} : vector<8x358xbf16> to vector<8x256xbf16>
    %97 = vector.extract_strided_slice %37 {offsets = [0, 20], sizes = [8, 256], strides = [1, 1]} : vector<8x358xbf16> to vector<8x256xbf16>
    %98 = vector.extract_strided_slice %37 {offsets = [0, 36], sizes = [8, 256], strides = [1, 1]} : vector<8x358xbf16> to vector<8x256xbf16>
    %99 = vector.extract_strided_slice %37 {offsets = [0, 52], sizes = [8, 256], strides = [1, 1]} : vector<8x358xbf16> to vector<8x256xbf16>
    %100 = vector.extract_strided_slice %37 {offsets = [0, 68], sizes = [8, 256], strides = [1, 1]} : vector<8x358xbf16> to vector<8x256xbf16>
    %101 = vector.extract_strided_slice %37 {offsets = [0, 84], sizes = [8, 256], strides = [1, 1]} : vector<8x358xbf16> to vector<8x256xbf16>
    %102 = vector.extract_strided_slice %37 {offsets = [0, 100], sizes = [8, 256], strides = [1, 1]} : vector<8x358xbf16> to vector<8x256xbf16>
    %103 = tpu.concatenate %96, %97, %98, %99, %100, %101, %102 in 0 : vector<8x256xbf16>, vector<8x256xbf16>, vector<8x256xbf16>, vector<8x256xbf16>, vector<8x256xbf16>, vector<8x256xbf16>, vector<8x256xbf16> -> vector<56x256xbf16>
    %104 = vector.broadcast %95 : vector<1x256xbf16> to vector<56x256xbf16>
    %105 = arith.mulf %103, %104 : vector<56x256xbf16>
    %106 = vector.extract_strided_slice %34 {offsets = [0, 224], sizes = [8, 56], strides = [1, 1]} : vector<8x392xbf16> to vector<8x56xbf16>
    %cst_29 = arith.constant dense<0.000000e+00> : vector<8x256xf32>
    %107 = tpu.matmul %106, %105, %cst_29 {dimension_numbers = #tpu.dot_dimension_numbers<[1], [0], [0], [1], [0, 0, 1, 1], [], []>} : vector<8x56xbf16>, vector<56x256xbf16>, vector<8x256xf32> -> vector<8x256xf32>
    %108 = arith.addf %94, %107 : vector<8x256xf32>
    %109 = vector.extract_strided_slice %0 {offsets = [5, 0], sizes = [1, 256], strides = [1, 1]} : vector<7x256xbf16> to vector<1x256xbf16>
    %110 = vector.extract_strided_slice %37 {offsets = [0, 5], sizes = [8, 256], strides = [1, 1]} : vector<8x358xbf16> to vector<8x256xbf16>
    %111 = vector.extract_strided_slice %37 {offsets = [0, 21], sizes = [8, 256], strides = [1, 1]} : vector<8x358xbf16> to vector<8x256xbf16>
    %112 = vector.extract_strided_slice %37 {offsets = [0, 37], sizes = [8, 256], strides = [1, 1]} : vector<8x358xbf16> to vector<8x256xbf16>
    %113 = vector.extract_strided_slice %37 {offsets = [0, 53], sizes = [8, 256], strides = [1, 1]} : vector<8x358xbf16> to vector<8x256xbf16>
    %114 = vector.extract_strided_slice %37 {offsets = [0, 69], sizes = [8, 256], strides = [1, 1]} : vector<8x358xbf16> to vector<8x256xbf16>
    %115 = vector.extract_strided_slice %37 {offsets = [0, 85], sizes = [8, 256], strides = [1, 1]} : vector<8x358xbf16> to vector<8x256xbf16>
    %116 = vector.extract_strided_slice %37 {offsets = [0, 101], sizes = [8, 256], strides = [1, 1]} : vector<8x358xbf16> to vector<8x256xbf16>
    %117 = tpu.concatenate %110, %111, %112, %113, %114, %115, %116 in 0 : vector<8x256xbf16>, vector<8x256xbf16>, vector<8x256xbf16>, vector<8x256xbf16>, vector<8x256xbf16>, vector<8x256xbf16>, vector<8x256xbf16> -> vector<56x256xbf16>
    %118 = vector.broadcast %109 : vector<1x256xbf16> to vector<56x256xbf16>
    %119 = arith.mulf %117, %118 : vector<56x256xbf16>
    %120 = vector.extract_strided_slice %34 {offsets = [0, 280], sizes = [8, 56], strides = [1, 1]} : vector<8x392xbf16> to vector<8x56xbf16>
    %cst_30 = arith.constant dense<0.000000e+00> : vector<8x256xf32>
    %121 = tpu.matmul %120, %119, %cst_30 {dimension_numbers = #tpu.dot_dimension_numbers<[1], [0], [0], [1], [0, 0, 1, 1], [], []>} : vector<8x56xbf16>, vector<56x256xbf16>, vector<8x256xf32> -> vector<8x256xf32>
    %122 = arith.addf %108, %121 : vector<8x256xf32>
    %123 = vector.extract_strided_slice %0 {offsets = [6, 0], sizes = [1, 256], strides = [1, 1]} : vector<7x256xbf16> to vector<1x256xbf16>
    %124 = vector.extract_strided_slice %37 {offsets = [0, 6], sizes = [8, 256], strides = [1, 1]} : vector<8x358xbf16> to vector<8x256xbf16>
    %125 = vector.extract_strided_slice %37 {offsets = [0, 22], sizes = [8, 256], strides = [1, 1]} : vector<8x358xbf16> to vector<8x256xbf16>
    %126 = vector.extract_strided_slice %37 {offsets = [0, 38], sizes = [8, 256], strides = [1, 1]} : vector<8x358xbf16> to vector<8x256xbf16>
    %127 = vector.extract_strided_slice %37 {offsets = [0, 54], sizes = [8, 256], strides = [1, 1]} : vector<8x358xbf16> to vector<8x256xbf16>
    %128 = vector.extract_strided_slice %37 {offsets = [0, 70], sizes = [8, 256], strides = [1, 1]} : vector<8x358xbf16> to vector<8x256xbf16>
    %129 = vector.extract_strided_slice %37 {offsets = [0, 86], sizes = [8, 256], strides = [1, 1]} : vector<8x358xbf16> to vector<8x256xbf16>
    %130 = vector.extract_strided_slice %37 {offsets = [0, 102], sizes = [8, 256], strides = [1, 1]} : vector<8x358xbf16> to vector<8x256xbf16>
    %131 = tpu.concatenate %124, %125, %126, %127, %128, %129, %130 in 0 : vector<8x256xbf16>, vector<8x256xbf16>, vector<8x256xbf16>, vector<8x256xbf16>, vector<8x256xbf16>, vector<8x256xbf16>, vector<8x256xbf16> -> vector<56x256xbf16>
    %132 = vector.broadcast %123 : vector<1x256xbf16> to vector<56x256xbf16>
    %133 = arith.mulf %131, %132 : vector<56x256xbf16>
    %134 = vector.extract_strided_slice %34 {offsets = [0, 336], sizes = [8, 56], strides = [1, 1]} : vector<8x392xbf16> to vector<8x56xbf16>
    %cst_31 = arith.constant dense<0.000000e+00> : vector<8x256xf32>
    %135 = tpu.matmul %134, %133, %cst_31 {dimension_numbers = #tpu.dot_dimension_numbers<[1], [0], [0], [1], [0, 0, 1, 1], [], []>} : vector<8x56xbf16>, vector<56x256xbf16>, vector<8x256xf32> -> vector<8x256xf32>
    %136 = arith.addf %122, %135 : vector<8x256xf32>
    %c0_32 = arith.constant 0 : index
    %c0_33 = arith.constant 0 : index
    %137 = vector.load %arg6[%c0_32, %c0_33] : memref<8x1xf32, #tpu.memory_space<vmem>>, vector<8x1xf32>
    %138 = vector.broadcast %137 : vector<8x1xf32> to vector<8x256xf32>
    %139 = arith.addf %136, %138 : vector<8x256xf32>
    %cst_34 = arith.constant dense<0.000000e+00> : vector<256xf32>
    %140 = vector.multi_reduction <add>, %139, %cst_34 [0] : vector<8x256xf32> to vector<256xf32>
    %141 = vector.shape_cast %140 : vector<256xf32> to vector<1x256xf32>
    %cst_35 = arith.constant 8.000000e+00 : f32
    %142 = vector.broadcast %cst_35 : f32 to vector<1x256xf32>
    %143 = arith.divf %141, %142 : vector<1x256xf32>
    %cst_36 = arith.constant dense<0xFF800000> : vector<256xf32>
    %144 = vector.multi_reduction <maximumf>, %139, %cst_36 [0] : vector<8x256xf32> to vector<256xf32>
    %145 = vector.shape_cast %144 : vector<256xf32> to vector<1x256xf32>
    %146 = tpu.concatenate %143, %145 in 0 : vector<1x256xf32>, vector<1x256xf32> -> vector<2x256xf32>
    %c0_37 = arith.constant 0 : index
    %c0_38 = arith.constant 0 : index
    %147 = vector.load %arg9[%c0_37, %c0_38] : memref<1x98xbf16, #tpu.memory_space<vmem>>, vector<1x98xbf16>
    %148 = arith.truncf %146 : vector<2x256xf32> to vector<2x256xbf16>
    %cst_39 = arith.constant 0.000000e+00 : bf16
    %149 = vector.broadcast %cst_39 : bf16 to vector<2x51xbf16>
    %150 = tpu.concatenate %149, %148, %149 in 1 : vector<2x51xbf16>, vector<2x256xbf16>, vector<2x51xbf16> -> vector<2x358xbf16>
    %cst_40 = arith.constant 0.000000e+00 : f32
    %151 = vector.broadcast %cst_40 : f32 to vector<1x256xf32>
    %152 = vector.extract_strided_slice %0 {offsets = [0, 0], sizes = [1, 256], strides = [1, 1]} : vector<7x256xbf16> to vector<1x256xbf16>
    %153 = vector.extract_strided_slice %150 {offsets = [0, 0], sizes = [2, 256], strides = [1, 1]} : vector<2x358xbf16> to vector<2x256xbf16>
    %154 = vector.extract_strided_slice %150 {offsets = [0, 16], sizes = [2, 256], strides = [1, 1]} : vector<2x358xbf16> to vector<2x256xbf16>
    %155 = vector.extract_strided_slice %150 {offsets = [0, 32], sizes = [2, 256], strides = [1, 1]} : vector<2x358xbf16> to vector<2x256xbf16>
    %156 = vector.extract_strided_slice %150 {offsets = [0, 48], sizes = [2, 256], strides = [1, 1]} : vector<2x358xbf16> to vector<2x256xbf16>
    %157 = vector.extract_strided_slice %150 {offsets = [0, 64], sizes = [2, 256], strides = [1, 1]} : vector<2x358xbf16> to vector<2x256xbf16>
    %158 = vector.extract_strided_slice %150 {offsets = [0, 80], sizes = [2, 256], strides = [1, 1]} : vector<2x358xbf16> to vector<2x256xbf16>
    %159 = vector.extract_strided_slice %150 {offsets = [0, 96], sizes = [2, 256], strides = [1, 1]} : vector<2x358xbf16> to vector<2x256xbf16>
    %160 = tpu.concatenate %153, %154, %155, %156, %157, %158, %159 in 0 : vector<2x256xbf16>, vector<2x256xbf16>, vector<2x256xbf16>, vector<2x256xbf16>, vector<2x256xbf16>, vector<2x256xbf16>, vector<2x256xbf16> -> vector<14x256xbf16>
    %161 = vector.broadcast %152 : vector<1x256xbf16> to vector<14x256xbf16>
    %162 = arith.mulf %160, %161 : vector<14x256xbf16>
    %163 = vector.extract_strided_slice %147 {offsets = [0, 0], sizes = [1, 14], strides = [1, 1]} : vector<1x98xbf16> to vector<1x14xbf16>
    %cst_41 = arith.constant dense<0.000000e+00> : vector<1x256xf32>
    %164 = tpu.matmul %163, %162, %cst_41 {dimension_numbers = #tpu.dot_dimension_numbers<[1], [0], [0], [1], [0, 0, 1, 1], [], []>} : vector<1x14xbf16>, vector<14x256xbf16>, vector<1x256xf32> -> vector<1x256xf32>
    %165 = arith.addf %151, %164 : vector<1x256xf32>
    %166 = vector.extract_strided_slice %0 {offsets = [1, 0], sizes = [1, 256], strides = [1, 1]} : vector<7x256xbf16> to vector<1x256xbf16>
    %167 = vector.extract_strided_slice %150 {offsets = [0, 1], sizes = [2, 256], strides = [1, 1]} : vector<2x358xbf16> to vector<2x256xbf16>
    %168 = vector.extract_strided_slice %150 {offsets = [0, 17], sizes = [2, 256], strides = [1, 1]} : vector<2x358xbf16> to vector<2x256xbf16>
    %169 = vector.extract_strided_slice %150 {offsets = [0, 33], sizes = [2, 256], strides = [1, 1]} : vector<2x358xbf16> to vector<2x256xbf16>
    %170 = vector.extract_strided_slice %150 {offsets = [0, 49], sizes = [2, 256], strides = [1, 1]} : vector<2x358xbf16> to vector<2x256xbf16>
    %171 = vector.extract_strided_slice %150 {offsets = [0, 65], sizes = [2, 256], strides = [1, 1]} : vector<2x358xbf16> to vector<2x256xbf16>
    %172 = vector.extract_strided_slice %150 {offsets = [0, 81], sizes = [2, 256], strides = [1, 1]} : vector<2x358xbf16> to vector<2x256xbf16>
    %173 = vector.extract_strided_slice %150 {offsets = [0, 97], sizes = [2, 256], strides = [1, 1]} : vector<2x358xbf16> to vector<2x256xbf16>
    %174 = tpu.concatenate %167, %168, %169, %170, %171, %172, %173 in 0 : vector<2x256xbf16>, vector<2x256xbf16>, vector<2x256xbf16>, vector<2x256xbf16>, vector<2x256xbf16>, vector<2x256xbf16>, vector<2x256xbf16> -> vector<14x256xbf16>
    %175 = vector.broadcast %166 : vector<1x256xbf16> to vector<14x256xbf16>
    %176 = arith.mulf %174, %175 : vector<14x256xbf16>
    %177 = vector.extract_strided_slice %147 {offsets = [0, 14], sizes = [1, 14], strides = [1, 1]} : vector<1x98xbf16> to vector<1x14xbf16>
    %cst_42 = arith.constant dense<0.000000e+00> : vector<1x256xf32>
    %178 = tpu.matmul %177, %176, %cst_42 {dimension_numbers = #tpu.dot_dimension_numbers<[1], [0], [0], [1], [0, 0, 1, 1], [], []>} : vector<1x14xbf16>, vector<14x256xbf16>, vector<1x256xf32> -> vector<1x256xf32>
    %179 = arith.addf %165, %178 : vector<1x256xf32>
    %180 = vector.extract_strided_slice %0 {offsets = [2, 0], sizes = [1, 256], strides = [1, 1]} : vector<7x256xbf16> to vector<1x256xbf16>
    %181 = vector.extract_strided_slice %150 {offsets = [0, 2], sizes = [2, 256], strides = [1, 1]} : vector<2x358xbf16> to vector<2x256xbf16>
    %182 = vector.extract_strided_slice %150 {offsets = [0, 18], sizes = [2, 256], strides = [1, 1]} : vector<2x358xbf16> to vector<2x256xbf16>
    %183 = vector.extract_strided_slice %150 {offsets = [0, 34], sizes = [2, 256], strides = [1, 1]} : vector<2x358xbf16> to vector<2x256xbf16>
    %184 = vector.extract_strided_slice %150 {offsets = [0, 50], sizes = [2, 256], strides = [1, 1]} : vector<2x358xbf16> to vector<2x256xbf16>
    %185 = vector.extract_strided_slice %150 {offsets = [0, 66], sizes = [2, 256], strides = [1, 1]} : vector<2x358xbf16> to vector<2x256xbf16>
    %186 = vector.extract_strided_slice %150 {offsets = [0, 82], sizes = [2, 256], strides = [1, 1]} : vector<2x358xbf16> to vector<2x256xbf16>
    %187 = vector.extract_strided_slice %150 {offsets = [0, 98], sizes = [2, 256], strides = [1, 1]} : vector<2x358xbf16> to vector<2x256xbf16>
    %188 = tpu.concatenate %181, %182, %183, %184, %185, %186, %187 in 0 : vector<2x256xbf16>, vector<2x256xbf16>, vector<2x256xbf16>, vector<2x256xbf16>, vector<2x256xbf16>, vector<2x256xbf16>, vector<2x256xbf16> -> vector<14x256xbf16>
    %189 = vector.broadcast %180 : vector<1x256xbf16> to vector<14x256xbf16>
    %190 = arith.mulf %188, %189 : vector<14x256xbf16>
    %191 = vector.extract_strided_slice %147 {offsets = [0, 28], sizes = [1, 14], strides = [1, 1]} : vector<1x98xbf16> to vector<1x14xbf16>
    %cst_43 = arith.constant dense<0.000000e+00> : vector<1x256xf32>
    %192 = tpu.matmul %191, %190, %cst_43 {dimension_numbers = #tpu.dot_dimension_numbers<[1], [0], [0], [1], [0, 0, 1, 1], [], []>} : vector<1x14xbf16>, vector<14x256xbf16>, vector<1x256xf32> -> vector<1x256xf32>
    %193 = arith.addf %179, %192 : vector<1x256xf32>
    %194 = vector.extract_strided_slice %0 {offsets = [3, 0], sizes = [1, 256], strides = [1, 1]} : vector<7x256xbf16> to vector<1x256xbf16>
    %195 = vector.extract_strided_slice %150 {offsets = [0, 3], sizes = [2, 256], strides = [1, 1]} : vector<2x358xbf16> to vector<2x256xbf16>
    %196 = vector.extract_strided_slice %150 {offsets = [0, 19], sizes = [2, 256], strides = [1, 1]} : vector<2x358xbf16> to vector<2x256xbf16>
    %197 = vector.extract_strided_slice %150 {offsets = [0, 35], sizes = [2, 256], strides = [1, 1]} : vector<2x358xbf16> to vector<2x256xbf16>
    %198 = vector.extract_strided_slice %150 {offsets = [0, 51], sizes = [2, 256], strides = [1, 1]} : vector<2x358xbf16> to vector<2x256xbf16>
    %199 = vector.extract_strided_slice %150 {offsets = [0, 67], sizes = [2, 256], strides = [1, 1]} : vector<2x358xbf16> to vector<2x256xbf16>
    %200 = vector.extract_strided_slice %150 {offsets = [0, 83], sizes = [2, 256], strides = [1, 1]} : vector<2x358xbf16> to vector<2x256xbf16>
    %201 = vector.extract_strided_slice %150 {offsets = [0, 99], sizes = [2, 256], strides = [1, 1]} : vector<2x358xbf16> to vector<2x256xbf16>
    %202 = tpu.concatenate %195, %196, %197, %198, %199, %200, %201 in 0 : vector<2x256xbf16>, vector<2x256xbf16>, vector<2x256xbf16>, vector<2x256xbf16>, vector<2x256xbf16>, vector<2x256xbf16>, vector<2x256xbf16> -> vector<14x256xbf16>
    %203 = vector.broadcast %194 : vector<1x256xbf16> to vector<14x256xbf16>
    %204 = arith.mulf %202, %203 : vector<14x256xbf16>
    %205 = vector.extract_strided_slice %147 {offsets = [0, 42], sizes = [1, 14], strides = [1, 1]} : vector<1x98xbf16> to vector<1x14xbf16>
    %cst_44 = arith.constant dense<0.000000e+00> : vector<1x256xf32>
    %206 = tpu.matmul %205, %204, %cst_44 {dimension_numbers = #tpu.dot_dimension_numbers<[1], [0], [0], [1], [0, 0, 1, 1], [], []>} : vector<1x14xbf16>, vector<14x256xbf16>, vector<1x256xf32> -> vector<1x256xf32>
    %207 = arith.addf %193, %206 : vector<1x256xf32>
    %208 = vector.extract_strided_slice %0 {offsets = [4, 0], sizes = [1, 256], strides = [1, 1]} : vector<7x256xbf16> to vector<1x256xbf16>
    %209 = vector.extract_strided_slice %150 {offsets = [0, 4], sizes = [2, 256], strides = [1, 1]} : vector<2x358xbf16> to vector<2x256xbf16>
    %210 = vector.extract_strided_slice %150 {offsets = [0, 20], sizes = [2, 256], strides = [1, 1]} : vector<2x358xbf16> to vector<2x256xbf16>
    %211 = vector.extract_strided_slice %150 {offsets = [0, 36], sizes = [2, 256], strides = [1, 1]} : vector<2x358xbf16> to vector<2x256xbf16>
    %212 = vector.extract_strided_slice %150 {offsets = [0, 52], sizes = [2, 256], strides = [1, 1]} : vector<2x358xbf16> to vector<2x256xbf16>
    %213 = vector.extract_strided_slice %150 {offsets = [0, 68], sizes = [2, 256], strides = [1, 1]} : vector<2x358xbf16> to vector<2x256xbf16>
    %214 = vector.extract_strided_slice %150 {offsets = [0, 84], sizes = [2, 256], strides = [1, 1]} : vector<2x358xbf16> to vector<2x256xbf16>
    %215 = vector.extract_strided_slice %150 {offsets = [0, 100], sizes = [2, 256], strides = [1, 1]} : vector<2x358xbf16> to vector<2x256xbf16>
    %216 = tpu.concatenate %209, %210, %211, %212, %213, %214, %215 in 0 : vector<2x256xbf16>, vector<2x256xbf16>, vector<2x256xbf16>, vector<2x256xbf16>, vector<2x256xbf16>, vector<2x256xbf16>, vector<2x256xbf16> -> vector<14x256xbf16>
    %217 = vector.broadcast %208 : vector<1x256xbf16> to vector<14x256xbf16>
    %218 = arith.mulf %216, %217 : vector<14x256xbf16>
    %219 = vector.extract_strided_slice %147 {offsets = [0, 56], sizes = [1, 14], strides = [1, 1]} : vector<1x98xbf16> to vector<1x14xbf16>
    %cst_45 = arith.constant dense<0.000000e+00> : vector<1x256xf32>
    %220 = tpu.matmul %219, %218, %cst_45 {dimension_numbers = #tpu.dot_dimension_numbers<[1], [0], [0], [1], [0, 0, 1, 1], [], []>} : vector<1x14xbf16>, vector<14x256xbf16>, vector<1x256xf32> -> vector<1x256xf32>
    %221 = arith.addf %207, %220 : vector<1x256xf32>
    %222 = vector.extract_strided_slice %0 {offsets = [5, 0], sizes = [1, 256], strides = [1, 1]} : vector<7x256xbf16> to vector<1x256xbf16>
    %223 = vector.extract_strided_slice %150 {offsets = [0, 5], sizes = [2, 256], strides = [1, 1]} : vector<2x358xbf16> to vector<2x256xbf16>
    %224 = vector.extract_strided_slice %150 {offsets = [0, 21], sizes = [2, 256], strides = [1, 1]} : vector<2x358xbf16> to vector<2x256xbf16>
    %225 = vector.extract_strided_slice %150 {offsets = [0, 37], sizes = [2, 256], strides = [1, 1]} : vector<2x358xbf16> to vector<2x256xbf16>
    %226 = vector.extract_strided_slice %150 {offsets = [0, 53], sizes = [2, 256], strides = [1, 1]} : vector<2x358xbf16> to vector<2x256xbf16>
    %227 = vector.extract_strided_slice %150 {offsets = [0, 69], sizes = [2, 256], strides = [1, 1]} : vector<2x358xbf16> to vector<2x256xbf16>
    %228 = vector.extract_strided_slice %150 {offsets = [0, 85], sizes = [2, 256], strides = [1, 1]} : vector<2x358xbf16> to vector<2x256xbf16>
    %229 = vector.extract_strided_slice %150 {offsets = [0, 101], sizes = [2, 256], strides = [1, 1]} : vector<2x358xbf16> to vector<2x256xbf16>
    %230 = tpu.concatenate %223, %224, %225, %226, %227, %228, %229 in 0 : vector<2x256xbf16>, vector<2x256xbf16>, vector<2x256xbf16>, vector<2x256xbf16>, vector<2x256xbf16>, vector<2x256xbf16>, vector<2x256xbf16> -> vector<14x256xbf16>
    %231 = vector.broadcast %222 : vector<1x256xbf16> to vector<14x256xbf16>
    %232 = arith.mulf %230, %231 : vector<14x256xbf16>
    %233 = vector.extract_strided_slice %147 {offsets = [0, 70], sizes = [1, 14], strides = [1, 1]} : vector<1x98xbf16> to vector<1x14xbf16>
    %cst_46 = arith.constant dense<0.000000e+00> : vector<1x256xf32>
    %234 = tpu.matmul %233, %232, %cst_46 {dimension_numbers = #tpu.dot_dimension_numbers<[1], [0], [0], [1], [0, 0, 1, 1], [], []>} : vector<1x14xbf16>, vector<14x256xbf16>, vector<1x256xf32> -> vector<1x256xf32>
    %235 = arith.addf %221, %234 : vector<1x256xf32>
    %236 = vector.extract_strided_slice %0 {offsets = [6, 0], sizes = [1, 256], strides = [1, 1]} : vector<7x256xbf16> to vector<1x256xbf16>
    %237 = vector.extract_strided_slice %150 {offsets = [0, 6], sizes = [2, 256], strides = [1, 1]} : vector<2x358xbf16> to vector<2x256xbf16>
    %238 = vector.extract_strided_slice %150 {offsets = [0, 22], sizes = [2, 256], strides = [1, 1]} : vector<2x358xbf16> to vector<2x256xbf16>
    %239 = vector.extract_strided_slice %150 {offsets = [0, 38], sizes = [2, 256], strides = [1, 1]} : vector<2x358xbf16> to vector<2x256xbf16>
    %240 = vector.extract_strided_slice %150 {offsets = [0, 54], sizes = [2, 256], strides = [1, 1]} : vector<2x358xbf16> to vector<2x256xbf16>
    %241 = vector.extract_strided_slice %150 {offsets = [0, 70], sizes = [2, 256], strides = [1, 1]} : vector<2x358xbf16> to vector<2x256xbf16>
    %242 = vector.extract_strided_slice %150 {offsets = [0, 86], sizes = [2, 256], strides = [1, 1]} : vector<2x358xbf16> to vector<2x256xbf16>
    %243 = vector.extract_strided_slice %150 {offsets = [0, 102], sizes = [2, 256], strides = [1, 1]} : vector<2x358xbf16> to vector<2x256xbf16>
    %244 = tpu.concatenate %237, %238, %239, %240, %241, %242, %243 in 0 : vector<2x256xbf16>, vector<2x256xbf16>, vector<2x256xbf16>, vector<2x256xbf16>, vector<2x256xbf16>, vector<2x256xbf16>, vector<2x256xbf16> -> vector<14x256xbf16>
    %245 = vector.broadcast %236 : vector<1x256xbf16> to vector<14x256xbf16>
    %246 = arith.mulf %244, %245 : vector<14x256xbf16>
    %247 = vector.extract_strided_slice %147 {offsets = [0, 84], sizes = [1, 14], strides = [1, 1]} : vector<1x98xbf16> to vector<1x14xbf16>
    %cst_47 = arith.constant dense<0.000000e+00> : vector<1x256xf32>
    %248 = tpu.matmul %247, %246, %cst_47 {dimension_numbers = #tpu.dot_dimension_numbers<[1], [0], [0], [1], [0, 0, 1, 1], [], []>} : vector<1x14xbf16>, vector<14x256xbf16>, vector<1x256xf32> -> vector<1x256xf32>
    %249 = arith.addf %235, %248 : vector<1x256xf32>
    %cst_48 = arith.constant 5.000000e-01 : f32
    %250 = vector.broadcast %cst_48 : f32 to vector<1x256xf32>
    %251 = arith.mulf %250, %249 : vector<1x256xf32>
    %252 = math.tanh %251 : vector<1x256xf32>
    %cst_49 = arith.constant 5.000000e-01 : f32
    %253 = vector.broadcast %cst_49 : f32 to vector<1x256xf32>
    %254 = arith.mulf %253, %252 : vector<1x256xf32>
    %cst_50 = arith.constant 5.000000e-01 : f32
    %255 = vector.broadcast %cst_50 : f32 to vector<1x256xf32>
    %256 = arith.addf %254, %255 : vector<1x256xf32>
    %257 = vector.broadcast %256 : vector<1x256xf32> to vector<8x256xf32>
    %258 = arith.mulf %139, %257 : vector<8x256xf32>
    %259 = arith.addf %258, %33 : vector<8x256xf32>
    %c0_51 = arith.constant 0 : index
    %c0_52 = arith.constant 0 : index
    %260 = vector.load %arg10[%c0_51, %c0_52] : memref<32x8xbf16, #tpu.memory_space<vmem>>, vector<32x8xbf16>
    %261 = arith.truncf %259 : vector<8x256xf32> to vector<8x256xbf16>
    %cst_53 = arith.constant dense<0.000000e+00> : vector<32x256xf32>
    %262 = tpu.matmul %260, %261, %cst_53 {dimension_numbers = #tpu.dot_dimension_numbers<[1], [0], [0], [1], [0, 0, 1, 1], [], []>} : vector<32x8xbf16>, vector<8x256xbf16>, vector<32x256xf32> -> vector<32x256xf32>
    %c0_54 = arith.constant 0 : index
    %c0_55 = arith.constant 0 : index
    %263 = vector.load %arg11[%c0_54, %c0_55] : memref<32x1xf32, #tpu.memory_space<vmem>>, vector<32x1xf32>
    %264 = vector.broadcast %263 : vector<32x1xf32> to vector<32x256xf32>
    %265 = arith.addf %262, %264 : vector<32x256xf32>
    %c0_56 = arith.constant 0 : index
    %c0_57 = arith.constant 0 : index
    %c0_58 = arith.constant 0 : index
    %266 = vector.load %arg12[%c0_56, %c0_57, %c0_58] : memref<1x32x256xf32, #tpu.memory_space<vmem>>, vector<1x32x256xf32>
    %267 = vector.shape_cast %266 : vector<1x32x256xf32> to vector<32x256xf32>
    %268 = vector.shape_cast %265 : vector<32x256xf32> to vector<1x32x256xf32>
    tpu.vector_store %arg12[%c0_56, %c0_57, %c0_58], %268 {strides = array<i32>} : memref<1x32x256xf32, #tpu.memory_space<vmem>>, vector<1x32x256xf32>,
    return
  }
  func.func @transform_0(%arg0: i32) -> (i32, i32, i32) {
    %c0_i32 = arith.constant 0 : i32
    %c0_i32_0 = arith.constant 0 : i32
    %c0_i32_1 = arith.constant 0 : i32
    return %arg0, %c0_i32, %c0_i32_0 : i32, i32, i32
  }
  func.func @transform_1(%arg0: i32) -> (i32, i32) {
    %c0_i32 = arith.constant 0 : i32
    %c0_i32_0 = arith.constant 0 : i32
    %c0_i32_1 = arith.constant 0 : i32
    return %c0_i32, %c0_i32_0 : i32, i32
  }
  func.func @transform_2(%arg0: i32) -> (i32, i32) {
    %c0_i32 = arith.constant 0 : i32
    %c0_i32_0 = arith.constant 0 : i32
    %c0_i32_1 = arith.constant 0 : i32
    return %c0_i32, %c0_i32_0 : i32, i32
  }
  func.func @transform_3(%arg0: i32) -> (i32, i32) {
    %c0_i32 = arith.constant 0 : i32
    %c0_i32_0 = arith.constant 0 : i32
    %c0_i32_1 = arith.constant 0 : i32
    return %c0_i32, %c0_i32_0 : i32, i32
  }
  func.func @transform_4(%arg0: i32) -> (i32, i32) {
    %c0_i32 = arith.constant 0 : i32
    %c0_i32_0 = arith.constant 0 : i32
    %c0_i32_1 = arith.constant 0 : i32
    return %c0_i32, %c0_i32_0 : i32, i32
  }
  func.func @transform_5(%arg0: i32) -> (i32, i32) {
    %c0_i32 = arith.constant 0 : i32
    %c0_i32_0 = arith.constant 0 : i32
    %c0_i32_1 = arith.constant 0 : i32
    return %c0_i32, %c0_i32_0 : i32, i32
  }
  func.func @transform_6(%arg0: i32) -> (i32, i32) {
    %c0_i32 = arith.constant 0 : i32
    %c0_i32_0 = arith.constant 0 : i32
    %c0_i32_1 = arith.constant 0 : i32
    return %c0_i32, %c0_i32_0 : i32, i32
  }
  func.func @transform_7(%arg0: i32) -> (i32, i32) {
    %c0_i32 = arith.constant 0 : i32
    %c0_i32_0 = arith.constant 0 : i32
    %c0_i32_1 = arith.constant 0 : i32
    return %c0_i32, %c0_i32_0 : i32, i32
  }
  func.func @transform_8(%arg0: i32) -> (i32, i32) {
    %c0_i32 = arith.constant 0 : i32
    %c0_i32_0 = arith.constant 0 : i32
    %c0_i32_1 = arith.constant 0 : i32
    return %c0_i32, %c0_i32_0 : i32, i32
  }
  func.func @transform_9(%arg0: i32) -> (i32, i32) {
    %c0_i32 = arith.constant 0 : i32
    %c0_i32_0 = arith.constant 0 : i32
    %c0_i32_1 = arith.constant 0 : i32
    return %c0_i32, %c0_i32_0 : i32, i32
  }
  func.func @transform_10(%arg0: i32) -> (i32, i32) {
    %c0_i32 = arith.constant 0 : i32
    %c0_i32_0 = arith.constant 0 : i32
    %c0_i32_1 = arith.constant 0 : i32
    return %c0_i32, %c0_i32_0 : i32, i32
  }
  func.func @transform_11(%arg0: i32) -> (i32, i32, i32) {
    %c0_i32 = arith.constant 0 : i32
    %c0_i32_0 = arith.constant 0 : i32
    %c0_i32_1 = arith.constant 0 : i32
    return %arg0, %c0_i32, %c0_i32_0 : i32, i32, i32
  }
}

</mosaic_0001>

<llo_original>
// kernel: tpu_custom_call.1
$region0: #{tpu_custom_call.1}
  #allocation0 [shape = 'u32[]', space=smem, size = 0x4, offset = 0x4, fixed_abs, tag = 'smem constant byte address 0x4 - core index']
  #allocation1 [shape = 'u32[72,128]{1,0:T(1,128)}', space=vmem, size = 0x9000, scoped, tag = 'internal scratch']
  %s0 = inlined_call_operand.hbm [shape: f32[2,32,256], index: 0, kind: input, shape index: {}]
  %s1 = inlined_call_operand.vmem [shape: bf16[7,256], index: 1, kind: input, shape index: {}]
  %s2 = inlined_call_operand.vmem [shape: bf16[8,32], index: 2, kind: input, shape index: {}]
  %s3 = inlined_call_operand.vmem [shape: f32[8,1], index: 3, kind: input, shape index: {}]
  %s4 = inlined_call_operand.vmem [shape: bf16[8,392], index: 4, kind: input, shape index: {}]
  %s5 = inlined_call_operand.vmem [shape: f32[8,1], index: 5, kind: input, shape index: {}]
  %s6 = inlined_call_operand.vmem [shape: f32[2,8], index: 6, kind: input, shape index: {}]
  %s7 = inlined_call_operand.vmem [shape: f32[8,2], index: 7, kind: input, shape index: {}]
  %s8 = inlined_call_operand.vmem [shape: bf16[1,98], index: 8, kind: input, shape index: {}]
  %s9 = inlined_call_operand.vmem [shape: bf16[32,8], index: 9, kind: input, shape index: {}]
  %s10 = inlined_call_operand.vmem [shape: f32[32,1], index: 10, kind: input, shape index: {}]
  %s11 = inlined_call_operand.hbm [shape: f32[2,32,256], index: 11, kind: output, shape index: {}]
  %s12 = sld [smem:[#allocation0]]
  $region81: #{tpu_custom_call.1} parent=0
    _
  %s14 = ssub.s32 1, %s12
  %s15 = scalar_select 0, %s14, %s12
  $region1: #{tpu_custom_call.1} parent=0
    #allocation2 [shape = 'u8[65536]{0}', space=vmem, size = 0x10000, scoped, tag = 'input window, operand 0']
    #allocation3 [shape = 's32[2]{0}', space=sflag, size = 0x8, scoped, tag = 'scoped memory for tpu_custom_call.1']
    #allocation4 [shape = 's32[2]{0}', space=sflag, size = 0x8, scoped, tag = 'scoped memory for tpu_custom_call.1']
    #allocation5 [shape = 'u8[65536]{0}', space=vmem, size = 0x10000, scoped, tag = 'output window, operand 0']
    %16 = vsyncpa [#allocation3], 0
    %s17 = scalar_lea.sflag [#allocation3], 1
    %18 = vsyncpa %s17, 0
    %19 = vsyncpa [#allocation4], 0
    %s20 = scalar_lea.sflag [#allocation4], 1
    %21 = vsyncpa %s20, 0
    loop: start=0, step=1, limit=4
    $region2: #{tpu_custom_call.1} parent=1 // loop_pre_header
      _
    $region3: #{tpu_custom_call.1} parent=1 // loop_header
      %s23 = sphi 0, %s27
      %p24 = scmp.ge.s32.totalorder %s23, 4
      %s33 = sphi 0, %s35
      %s36 = sphi 0, %s33
      %s37 = sphi 0, %s36
      %s53 = sphi 0, %s37
      %s57 = sphi 0, %s57
      %s59 = sphi 0, %s57
      %s60 = sphi 0, %s59
      %s74 = sphi 0, %s60
      %s78 = sphi 0, %s78
      %s80 = sphi 0, %s78
      %s81 = sphi 0, %s80
      %s95 = sphi 0, %s81
      %s99 = sphi 0, %s99
      %s101 = sphi 0, %s99
      %s102 = sphi 0, %s101
      %s116 = sphi 0, %s102
      %s120 = sphi 0, %s120
      %s122 = sphi 0, %s120
      %s123 = sphi 0, %s122
      %s137 = sphi 0, %s123
      %s141 = sphi 0, %s141
      %s143 = sphi 0, %s141
      %s144 = sphi 0, %s143
      %s158 = sphi 0, %s144
      %s162 = sphi 0, %s162
      %s164 = sphi 0, %s162
      %s165 = sphi 0, %s164
      %s179 = sphi 0, %s165
      %s183 = sphi 0, %s183
      %s185 = sphi 0, %s183
      %s186 = sphi 0, %s185
      %s200 = sphi 0, %s186
      %s204 = sphi 0, %s204
      %s206 = sphi 0, %s204
      %s207 = sphi 0, %s206
      %s221 = sphi 0, %s207
      %s225 = sphi 0, %s225
      %s227 = sphi 0, %s225
      %s228 = sphi 0, %s227
      %s242 = sphi 0, %s228
      %s246 = sphi 0, %s246
      %s248 = sphi 0, %s246
      %s249 = sphi 0, %s248
      %s263 = sphi 0, %s249
      %s269 = sphi 0, %s271
      %s272 = sphi 0, %s269
      %s273 = sphi 0, %s272
      %s289 = sphi 0, %s273
    $region4: #{tpu_custom_call.1} parent=1 // loop_header_branch
      %26 = sbr.rel (%p24) target = $region8
    $region5: #{tpu_custom_call.1} parent=1 // loop_body
      %s28 = ssub.s32 %s23, 1
      %s29 = ssub.s32 %s23, 2
      %s30 = sadd.s32 %s23, 1
      %s31 = ssub.s32 %s23, %s30
      %p32 = scmp.eq.s32.totalorder %s31, 0
      %s34 = sadd.s32 %s33, 1
      %s35 = scalar_select %p32, %s33, %s34
      %p38 = pneg %p32
      %p39 = scmp.eq.s32.totalorder %s23, 1
      %p40 = por %p38, %p39
      %p41 = scmp.ne.s32.totalorder %s33, %s36
      %p42 = scmp.eq.s32.totalorder %s23, 0
      %p43 = por %p41, %p42
      %p44 = scmp.ne.s32.totalorder %s33, %s36
      %p45 = scmp.eq.s32.totalorder %s28, 1
      %p46 = por %p44, %p45
      %p47 = scmp.ne.s32.totalorder %s36, %s37
      %p48 = scmp.eq.s32.totalorder %s28, 0
      %p49 = por %p47, %p48
      %p50 = scmp.ne.s32.totalorder %s36, %s37
      %p51 = scmp.eq.s32.totalorder %s29, 1
      %p52 = por %p50, %p51
      %p54 = scmp.ne.s32.totalorder %s37, %s53
      %p55 = scmp.eq.s32.totalorder %s29, 0
      %p56 = por %p54, %p55
      %s58 = sadd.s32 %s57, 1
      %p61 = scmp.eq.s32.totalorder %s23, 1
      %p62 = scmp.ne.s32.totalorder %s57, %s59
      %p63 = scmp.eq.s32.totalorder %s23, 0
      %p64 = por %p62, %p63
      %p65 = scmp.ne.s32.totalorder %s57, %s59
      %p66 = scmp.eq.s32.totalorder %s28, 1
      %p67 = por %p65, %p66
      %p68 = scmp.ne.s32.totalorder %s59, %s60
      %p69 = scmp.eq.s32.totalorder %s28, 0
      %p70 = por %p68, %p69
      %p71 = scmp.ne.s32.totalorder %s59, %s60
      %p72 = scmp.eq.s32.totalorder %s29, 1
      %p73 = por %p71, %p72
      %p75 = scmp.ne.s32.totalorder %s60, %s74
      %p76 = scmp.eq.s32.totalorder %s29, 0
      %p77 = por %p75, %p76
      %s79 = sadd.s32 %s78, 1
      %p82 = scmp.eq.s32.totalorder %s23, 1
      %p83 = scmp.ne.s32.totalorder %s78, %s80
      %p84 = scmp.eq.s32.totalorder %s23, 0
      %p85 = por %p83, %p84
      %p86 = scmp.ne.s32.totalorder %s78, %s80
      %p87 = scmp.eq.s32.totalorder %s28, 1
      %p88 = por %p86, %p87
      %p89 = scmp.ne.s32.totalorder %s80, %s81
      %p90 = scmp.eq.s32.totalorder %s28, 0
      %p91 = por %p89, %p90
      %p92 = scmp.ne.s32.totalorder %s80, %s81
      %p93 = scmp.eq.s32.totalorder %s29, 1
      %p94 = por %p92, %p93
      %p96 = scmp.ne.s32.totalorder %s81, %s95
      %p97 = scmp.eq.s32.totalorder %s29, 0
      %p98 = por %p96, %p97
      %s100 = sadd.s32 %s99, 1
      %p103 = scmp.eq.s32.totalorder %s23, 1
      %p104 = scmp.ne.s32.totalorder %s99, %s101
      %p105 = scmp.eq.s32.totalorder %s23, 0
      %p106 = por %p104, %p105
      %p107 = scmp.ne.s32.totalorder %s99, %s101
      %p108 = scmp.eq.s32.totalorder %s28, 1
      %p109 = por %p107, %p108
      %p110 = scmp.ne.s32.totalorder %s101, %s102
      %p111 = scmp.eq.s32.totalorder %s28, 0
      %p112 = por %p110, %p111
      %p113 = scmp.ne.s32.totalorder %s101, %s102
      %p114 = scmp.eq.s32.totalorder %s29, 1
      %p115 = por %p113, %p114
      %p117 = scmp.ne.s32.totalorder %s102, %s116
      %p118 = scmp.eq.s32.totalorder %s29, 0
      %p119 = por %p117, %p118
      %s121 = sadd.s32 %s120, 1
      %p124 = scmp.eq.s32.totalorder %s23, 1
      %p125 = scmp.ne.s32.totalorder %s120, %s122
      %p126 = scmp.eq.s32.totalorder %s23, 0
      %p127 = por %p125, %p126
      %p128 = scmp.ne.s32.totalorder %s120, %s122
      %p129 = scmp.eq.s32.totalorder %s28, 1
      %p130 = por %p128, %p129
      %p131 = scmp.ne.s32.totalorder %s122, %s123
      %p132 = scmp.eq.s32.totalorder %s28, 0
      %p133 = por %p131, %p132
      %p134 = scmp.ne.s32.totalorder %s122, %s123
      %p135 = scmp.eq.s32.totalorder %s29, 1
      %p136 = por %p134, %p135
      %p138 = scmp.ne.s32.totalorder %s123, %s137
      %p139 = scmp.eq.s32.totalorder %s29, 0
      %p140 = por %p138, %p139
      %s142 = sadd.s32 %s141, 1
      %p145 = scmp.eq.s32.totalorder %s23, 1
      %p146 = scmp.ne.s32.totalorder %s141, %s143
      %p147 = scmp.eq.s32.totalorder %s23, 0
      %p148 = por %p146, %p147
      %p149 = scmp.ne.s32.totalorder %s141, %s143
      %p150 = scmp.eq.s32.totalorder %s28, 1
      %p151 = por %p149, %p150
      %p152 = scmp.ne.s32.totalorder %s143, %s144
      %p153 = scmp.eq.s32.totalorder %s28, 0
      %p154 = por %p152, %p153
      %p155 = scmp.ne.s32.totalorder %s143, %s144
      %p156 = scmp.eq.s32.totalorder %s29, 1
      %p157 = por %p155, %p156
      %p159 = scmp.ne.s32.totalorder %s144, %s158
      %p160 = scmp.eq.s32.totalorder %s29, 0
      %p161 = por %p159, %p160
      %s163 = sadd.s32 %s162, 1
      %p166 = scmp.eq.s32.totalorder %s23, 1
      %p167 = scmp.ne.s32.totalorder %s162, %s164
      %p168 = scmp.eq.s32.totalorder %s23, 0
      %p169 = por %p167, %p168
      %p170 = scmp.ne.s32.totalorder %s162, %s164
      %p171 = scmp.eq.s32.totalorder %s28, 1
      %p172 = por %p170, %p171
      %p173 = scmp.ne.s32.totalorder %s164, %s165
      %p174 = scmp.eq.s32.totalorder %s28, 0
      %p175 = por %p173, %p174
      %p176 = scmp.ne.s32.totalorder %s164, %s165
      %p177 = scmp.eq.s32.totalorder %s29, 1
      %p178 = por %p176, %p177
      %p180 = scmp.ne.s32.totalorder %s165, %s179
      %p181 = scmp.eq.s32.totalorder %s29, 0
      %p182 = por %p180, %p181
      %s184 = sadd.s32 %s183, 1
      %p187 = scmp.eq.s32.totalorder %s23, 1
      %p188 = scmp.ne.s32.totalorder %s183, %s185
      %p189 = scmp.eq.s32.totalorder %s23, 0
      %p190 = por %p188, %p189
      %p191 = scmp.ne.s32.totalorder %s183, %s185
      %p192 = scmp.eq.s32.totalorder %s28, 1
      %p193 = por %p191, %p192
      %p194 = scmp.ne.s32.totalorder %s185, %s186
      %p195 = scmp.eq.s32.totalorder %s28, 0
      %p196 = por %p194, %p195
      %p197 = scmp.ne.s32.totalorder %s185, %s186
      %p198 = scmp.eq.s32.totalorder %s29, 1
      %p199 = por %p197, %p198
      %p201 = scmp.ne.s32.totalorder %s186, %s200
      %p202 = scmp.eq.s32.totalorder %s29, 0
      %p203 = por %p201, %p202
      %s205 = sadd.s32 %s204, 1
      %p208 = scmp.eq.s32.totalorder %s23, 1
      %p209 = scmp.ne.s32.totalorder %s204, %s206
      %p210 = scmp.eq.s32.totalorder %s23, 0
      %p211 = por %p209, %p210
      %p212 = scmp.ne.s32.totalorder %s204, %s206
      %p213 = scmp.eq.s32.totalorder %s28, 1
      %p214 = por %p212, %p213
      %p215 = scmp.ne.s32.totalorder %s206, %s207
      %p216 = scmp.eq.s32.totalorder %s28, 0
      %p217 = por %p215, %p216
      %p218 = scmp.ne.s32.totalorder %s206, %s207
      %p219 = scmp.eq.s32.totalorder %s29, 1
      %p220 = por %p218, %p219
      %p222 = scmp.ne.s32.totalorder %s207, %s221
      %p223 = scmp.eq.s32.totalorder %s29, 0
      %p224 = por %p222, %p223
      %s226 = sadd.s32 %s225, 1
      %p229 = scmp.eq.s32.totalorder %s23, 1
      %p230 = scmp.ne.s32.totalorder %s225, %s227
      %p231 = scmp.eq.s32.totalorder %s23, 0
      %p232 = por %p230, %p231
      %p233 = scmp.ne.s32.totalorder %s225, %s227
      %p234 = scmp.eq.s32.totalorder %s28, 1
      %p235 = por %p233, %p234
      %p236 = scmp.ne.s32.totalorder %s227, %s228
      %p237 = scmp.eq.s32.totalorder %s28, 0
      %p238 = por %p236, %p237
      %p239 = scmp.ne.s32.totalorder %s227, %s228
      %p240 = scmp.eq.s32.totalorder %s29, 1
      %p241 = por %p239, %p240
      %p243 = scmp.ne.s32.totalorder %s228, %s242
      %p244 = scmp.eq.s32.totalorder %s29, 0
      %p245 = por %p243, %p244
      %s247 = sadd.s32 %s246, 1
      %p250 = scmp.eq.s32.totalorder %s23, 1
      %p251 = scmp.ne.s32.totalorder %s246, %s248
      %p252 = scmp.eq.s32.totalorder %s23, 0
      %p253 = por %p251, %p252
      %p254 = scmp.ne.s32.totalorder %s246, %s248
      %p255 = scmp.eq.s32.totalorder %s28, 1
      %p256 = por %p254, %p255
      %p257 = scmp.ne.s32.totalorder %s248, %s249
      %p258 = scmp.eq.s32.totalorder %s28, 0
      %p259 = por %p257, %p258
      %p260 = scmp.ne.s32.totalorder %s248, %s249
      %p261 = scmp.eq.s32.totalorder %s29, 1
      %p262 = por %p260, %p261
      %p264 = scmp.ne.s32.totalorder %s249, %s263
      %p265 = scmp.eq.s32.totalorder %s29, 0
      %p266 = por %p264, %p265
      %s267 = ssub.s32 %s23, %s30
      %p268 = scmp.eq.s32.totalorder %s267, 0
      %s270 = sadd.s32 %s269, 1
      %s271 = scalar_select %p268, %s269, %s270
      %p274 = pneg %p268
      %p275 = scmp.eq.s32.totalorder %s23, 1
      %p276 = por %p274, %p275
      %p277 = scmp.ne.s32.totalorder %s269, %s272
      %p278 = scmp.eq.s32.totalorder %s23, 0
      %p279 = por %p277, %p278
      %p280 = scmp.ne.s32.totalorder %s269, %s272
      %p281 = scmp.eq.s32.totalorder %s28, 1
      %p282 = por %p280, %p281
      %p283 = scmp.ne.s32.totalorder %s272, %s273
      %p284 = scmp.eq.s32.totalorder %s28, 0
      %p285 = por %p283, %p284
      %p286 = scmp.ne.s32.totalorder %s272, %s273
      %p287 = scmp.eq.s32.totalorder %s29, 1
      %p288 = por %p286, %p287
      %p290 = scmp.ne.s32.totalorder %s273, %s289
      %p291 = scmp.eq.s32.totalorder %s29, 0
      %p292 = por %p290, %p291
      %p293 = scmp.le.s32.totalorder 1, %s23
      %p294 = scmp.lt.s32.totalorder %s23, 3
      %p295 = pnand %p293, %p294
      %p296 = pneg %p295
      // Predicated region
      $region9: #{tpu_custom_call.1} parent=5 // pred_check
        _
      $region10: #{tpu_custom_call.1} parent=5 // pred_check_branch
        %298 = sbr.rel (%p295) target = $region12
      $region11: #{tpu_custom_call.1} parent=5 // pred_region
        %s299 = ssub.s32 %s23, 1
        // Predicated region
        $region13: #{tpu_custom_call.1} parent=11 // pred_check
          %p300 = pneg %p70
        $region14: #{tpu_custom_call.1} parent=11 // pred_check_branch
          %302 = sbr.rel (%p300) target = $region16
        $region15: #{tpu_custom_call.1} parent=11 // pred_region
          _
        $region16: #{tpu_custom_call.1} parent=11 // pred_fallthru
          _
        // Predicated region
        $region17: #{tpu_custom_call.1} parent=11 // pred_check
          %p303 = pneg %p91
        $region18: #{tpu_custom_call.1} parent=11 // pred_check_branch
          %305 = sbr.rel (%p303) target = $region20
        $region19: #{tpu_custom_call.1} parent=11 // pred_region
          _
        $region20: #{tpu_custom_call.1} parent=11 // pred_fallthru
          _
        // Predicated region
        $region21: #{tpu_custom_call.1} parent=11 // pred_check
          %p306 = pneg %p112
        $region22: #{tpu_custom_call.1} parent=11 // pred_check_branch
          %308 = sbr.rel (%p306) target = $region24
        $region23: #{tpu_custom_call.1} parent=11 // pred_region
          _
        $region24: #{tpu_custom_call.1} parent=11 // pred_fallthru
          _
        // Predicated region
        $region25: #{tpu_custom_call.1} parent=11 // pred_check
          %p309 = pneg %p133
        $region26: #{tpu_custom_call.1} parent=11 // pred_check_branch
          %311 = sbr.rel (%p309) target = $region28
        $region27: #{tpu_custom_call.1} parent=11 // pred_region
          _
        $region28: #{tpu_custom_call.1} parent=11 // pred_fallthru
          _
        // Predicated region
        $region29: #{tpu_custom_call.1} parent=11 // pred_check
          %p312 = pneg %p154
        $region30: #{tpu_custom_call.1} parent=11 // pred_check_branch
          %314 = sbr.rel (%p312) target = $region32
        $region31: #{tpu_custom_call.1} parent=11 // pred_region
          _
        $region32: #{tpu_custom_call.1} parent=11 // pred_fallthru
          _
        // Predicated region
        $region33: #{tpu_custom_call.1} parent=11 // pred_check
          %p315 = pneg %p175
        $region34: #{tpu_custom_call.1} parent=11 // pred_check_branch
          %317 = sbr.rel (%p315) target = $region36
        $region35: #{tpu_custom_call.1} parent=11 // pred_region
          _
        $region36: #{tpu_custom_call.1} parent=11 // pred_fallthru
          _
        // Predicated region
        $region37: #{tpu_custom_call.1} parent=11 // pred_check
          %p318 = pneg %p196
        $region38: #{tpu_custom_call.1} parent=11 // pred_check_branch
          %320 = sbr.rel (%p318) target = $region40
        $region39: #{tpu_custom_call.1} parent=11 // pred_region
          _
        $region40: #{tpu_custom_call.1} parent=11 // pred_fallthru
          _
        // Predicated region
        $region41: #{tpu_custom_call.1} parent=11 // pred_check
          %p321 = pneg %p217
        $region42: #{tpu_custom_call.1} parent=11 // pred_check_branch
          %323 = sbr.rel (%p321) target = $region44
        $region43: #{tpu_custom_call.1} parent=11 // pred_region
          _
        $region44: #{tpu_custom_call.1} parent=11 // pred_fallthru
          _
        // Predicated region
        $region45: #{tpu_custom_call.1} parent=11 // pred_check
          %p324 = pneg %p238
        $region46: #{tpu_custom_call.1} parent=11 // pred_check_branch
          %326 = sbr.rel (%p324) target = $region48
        $region47: #{tpu_custom_call.1} parent=11 // pred_region
          _
        $region48: #{tpu_custom_call.1} parent=11 // pred_fallthru
          _
        // Predicated region
        $region49: #{tpu_custom_call.1} parent=11 // pred_check
          %p327 = pneg %p259
        $region50: #{tpu_custom_call.1} parent=11 // pred_check_branch
          %329 = sbr.rel (%p327) target = $region52
        $region51: #{tpu_custom_call.1} parent=11 // pred_region
          _
        $region52: #{tpu_custom_call.1} parent=11 // pred_fallthru
          _
      $region12: #{tpu_custom_call.1} parent=5 // pred_fallthru
        _
      %p330 = scmp.lt.s32.totalorder %s23, 2
      // Predicated region
      $region53: #{tpu_custom_call.1} parent=5 // pred_check
        %p331 = pneg %p330
      $region54: #{tpu_custom_call.1} parent=5 // pred_check_branch
        %333 = sbr.rel (%p331) target = $region56
      $region55: #{tpu_custom_call.1} parent=5 // pred_region
        // Predicated region
        $region57: #{tpu_custom_call.1} parent=55 // pred_check
          %p334 = pneg %p43
        $region58: #{tpu_custom_call.1} parent=55 // pred_check_branch
          %336 = sbr.rel (%p334) target = $region60
        $region59: #{tpu_custom_call.1} parent=55 // pred_region
          %s337 = sand.u32 %s33, 1
          %s338 = scalar_lea.sflag [#allocation3], %s337
          %s339 = sand.u32 %s33, 1
          %s340 = smul.addr %s339, 64
          %s341 = scalar_lea.vmem [#allocation2], %s340
          %343 = vsyncadd %s338, 0
          %s344 = smul.addr %s23, 8
          %s345 = smul.addr %s344, 8
          %s346 = scalar_lea.hbm %s0, %s345
          %s347 = sshll.u32 %s346, 4
          %s348 = int_to_ptr.hbm [resolvable:$true] %s347
          %s349 = sshll.u32 %s341, 4
          %s350 = int_to_ptr.vmem [resolvable:$true] %s349
          %355 = dma.hbm_to_vmem [thread:$0]  %s348, 1024, %s350, %s338, 256, 256, 16
        $region60: #{tpu_custom_call.1} parent=55 // pred_fallthru
          _
      $region56: #{tpu_custom_call.1} parent=5 // pred_fallthru
        _
      %p356 = scmp.le.s32.totalorder 1, %s23
      %p357 = scmp.lt.s32.totalorder %s23, 3
      %p358 = pnand %p356, %p357
      %p359 = pneg %p358
      // Predicated region
      $region61: #{tpu_custom_call.1} parent=5 // pred_check
        _
      $region62: #{tpu_custom_call.1} parent=5 // pred_check_branch
        %361 = sbr.rel (%p358) target = $region64
      $region63: #{tpu_custom_call.1} parent=5 // pred_region
        %s362 = ssub.s32 %s23, 1
        %s363 = sand.u32 %s36, 1
        %s364 = scalar_lea.sflag [#allocation3], %s363
        %s365 = sand.u32 %s36, 1
        %s366 = smul.addr %s365, 64
        %s367 = scalar_lea.vmem [#allocation2], %s366
        // Predicated region
        $region65: #{tpu_custom_call.1} parent=63 // pred_check
          %p368 = pneg %p49
        $region66: #{tpu_custom_call.1} parent=63 // pred_check_branch
          %370 = sbr.rel (%p368) target = $region68
        $region67: #{tpu_custom_call.1} parent=63 // pred_region
          %372 = dma.done %s364, 1024
        $region68: #{tpu_custom_call.1} parent=63 // pred_fallthru
          _
        %s373 = sand.u32 %s36, 1
        %s374 = scalar_lea.sflag [#allocation3], %s373
        %s375 = sand.u32 %s36, 1
        %s376 = smul.addr %s375, 64
        %s377 = scalar_lea.vmem [#allocation2], %s376
        %p378 = pneg %p49
        %p379 = pneg %p46
        %p380 = pneg %p70
        %p381 = pneg %p67
        %p382 = pneg %p91
        %p383 = pneg %p88
        %p384 = pneg %p112
        %p385 = pneg %p109
        %p386 = pneg %p133
        %p387 = pneg %p130
        %p388 = pneg %p154
        %p389 = pneg %p151
        %p390 = pneg %p175
        %p391 = pneg %p172
        %p392 = pneg %p196
        %p393 = pneg %p193
        %p394 = pneg %p217
        %p395 = pneg %p214
        %p396 = pneg %p238
        %p397 = pneg %p235
        %p398 = pneg %p259
        %p399 = pneg %p256
        %p400 = pneg %p285
        %p401 = pneg %p282
        %s402 = sand.u32 %s272, 1
        %s403 = scalar_lea.sflag [#allocation4], %s402
        %s404 = sand.u32 %s272, 1
        %s405 = smul.addr %s404, 64
        %s406 = scalar_lea.vmem [#allocation5], %s405
        %v408 = vld [vmem:[%s1] sm:$0xff]
        %v409 = vld [vmem:[%s367] sm:$0xff]
        %v410 = vld [vmem:[%s367 + $0x8] sm:$0xff]
        %v411 = vld [vmem:[%s367 + $0x10] sm:$0xff]
        %v412 = vld [vmem:[%s367 + $0x18] sm:$0xff]
        %v413 = vld [vmem:[%s367 + $0x20] sm:$0xff]
        %v414 = vld [vmem:[%s367 + $0x28] sm:$0xff]
        %v415 = vld [vmem:[%s367 + $0x30] sm:$0xff]
        %v416 = vld [vmem:[%s367 + $0x38] sm:$0xff]
        %v417 = vpack.c.bf16 %v411, %v409
        %v418 = vpack.c.bf16 %v412, %v410
        %v419 = vpack.c.bf16 %v415, %v413
        %v420 = vpack.c.bf16 %v416, %v414
        %v421 = vld [vmem:[%s2] sm:$0xf]
        %v422 = vld [vmem:[%s3] sm:$0xff]
        %424 = vset.pattern.permute.xlu0 0
        %425 = vperm.xlu0 %424, %v422
        %v426 = vpop.permute.xlu0 %425
        %vm428 = vcmask 261120
        %v430 = vsel %vm428, %v421, 0
        %432 = vmatpush.bf16.msra.mxu0 0
        %433 = vmatpush.bf16.msra.mxu0 0
        %434 = vmatpush.bf16.msra.mxu0 0
        %435 = vmatpush.bf16.msra.mxu0 0
        %436 = vmatpush.bf16.msra.mxu0 0
        %437 = vmatpush.bf16.msra.mxu0 0
        %438 = vmatpush.bf16.msra.mxu0 %v419
        %439 = vmatpush.bf16.msra.mxu0 %v417
        %440 = vmatmul.bf16.gmra.mxu0 %v430
        %v441 = vpop.f32.mrf.mxu0
        %v442 = vadd.f32 %v426, %v441
        %v443 = vpop.f32.mrf.mxu0
        %444 = vdwg.mxu0
        %445 = vmatpush.bf16.msra.mxu0 0
        %446 = vmatpush.bf16.msra.mxu0 0
        %447 = vmatpush.bf16.msra.mxu0 0
        %448 = vmatpush.bf16.msra.mxu0 0
        %449 = vmatpush.bf16.msra.mxu0 0
        %450 = vmatpush.bf16.msra.mxu0 0
        %451 = vmatpush.bf16.msra.mxu0 %v420
        %452 = vmatpush.bf16.msra.mxu0 %v418
        %453 = vmatmul.bf16.gmra.mxu0 %v430
        %v454 = vpop.f32.mrf.mxu0
        %v455 = vadd.f32 %v426, %v454
        %v456 = vpop.f32.mrf.mxu0
        %457 = vdwg.mxu0
        %v458 = vadd.f32 %v442, %v455
        %459 = vadd.xlane.f32.xlu0 %v458
        %v460 = vpop.xlane.xlu0 %459
        %v461 = vrcp.pop 256.0
        %v462 = vmul.f32 256.0, %v461
        %v463 = vsub.f32 1.0, %v462
        %v464 = vmul.f32 %v461, %v463
        %v465 = vadd.f32 %v461, %v464
        %vm466 = vweird.f32 %v461
        %v467 = vsel %vm466, %v461, %v465
        %v468 = vmul.f32 %v460, %v467
        %v469 = vmax.f32 %v442, %v455
        %470 = vmax.xlane.f32.xlu0 %v469
        %v471 = vpop.xlane.xlu0 %470
        %vm472 = vcmask 7168
        %v473 = vsel %vm472, %v468, %v471
        %v474 = vld [vmem:[%s6] sm:$0x3]
        %vm475 = vcmask 64512
        %v477 = vsel %vm475, %v474, 0
        %479 = vmatpush.msra.mxu0 0.0
        %480 = vmatpush.msra.mxu0 0.0
        %481 = vmatpush.msra.mxu0 0.0
        %482 = vmatpush.msra.mxu0 0.0
        %483 = vmatpush.msra.mxu0 0.0
        %484 = vmatpush.msra.mxu0 0.0
        %485 = vmatpush.msra.mxu0 0.0
        %486 = vmatpush.msra.mxu0 0.0
        %487 = vmatpush.msra.mxu0 0.0
        %488 = vmatpush.msra.mxu0 0.0
        %489 = vmatpush.msra.mxu0 0.0
        %490 = vmatpush.msra.mxu0 0.0
        %491 = vmatpush.msra.mxu0 0.0
        %492 = vmatpush.msra.mxu0 0.0
        %493 = vmatpush.msra.mxu0 0.0
        %494 = vmatpush.msra.mxu0 %v473
        %495 = vmatmul.f32.gmra.mxu0 %v477
        %v496 = vpop.f32.mrf.mxu0
        %v497 = vadd.f32 0.0, %v496
        %498 = vdwg.mxu0
        %v499 = vmax.f32 %v497, 0.0
        %v500 = vld [vmem:[%s7] sm:$0xff]
        %vm501 = vcmask 15360
        %v503 = vsel %vm501, %v500, 0
        %vm505 = vcmask 1041408
        %v507 = vsel %vm505, %v499, 0
        %509 = vmatpush.msra.mxu0 0.0
        %510 = vmatpush.msra.mxu0 0.0
        %511 = vmatpush.msra.mxu0 0.0
        %512 = vmatpush.msra.mxu0 0.0
        %513 = vmatpush.msra.mxu0 0.0
        %514 = vmatpush.msra.mxu0 0.0
        %515 = vmatpush.msra.mxu0 0.0
        %516 = vmatpush.msra.mxu0 0.0
        %517 = vmatpush.msra.mxu0 0.0
        %518 = vmatpush.msra.mxu0 0.0
        %519 = vmatpush.msra.mxu0 0.0
        %520 = vmatpush.msra.mxu0 0.0
        %521 = vmatpush.msra.mxu0 0.0
        %522 = vmatpush.msra.mxu0 0.0
        %523 = vmatpush.msra.mxu0 0.0
        %524 = vmatpush.msra.mxu0 %v507
        %525 = vmatmul.f32.gmra.mxu0 %v503
        %v526 = vpop.f32.mrf.mxu0
        %v527 = vadd.f32 0.0, %v526
        %528 = vdwg.mxu0
        %530 = vrot.lane.b32.xlu0 %v527, 127
        %v531 = vpop.permute.xlu0 %530
        %v533 = vadd.f32 %v527, %v531
        %v534 = vmul.f32 %v533, 0.5
        %v535 = vtanh.pop %v534
        %v536 = vmul.f32 %v535, 0.5
        %v537 = vadd.f32 %v536, 0.5
        %539 = vset.pattern.permute.xlu0 0
        %540 = vperm.xlu0 %539, %v537
        %v541 = vpop.permute.xlu0 %540
        %v543 = vmul.f32 %v442, %v541
        %v544 = vmul.f32 %v455, %v541
        %v545 = vld [vmem:[%s4] sm:$0xff]
        %v546 = vld [vmem:[%s4 + $0x8] sm:$0xff]
        %v547 = vpack.c.bf16 %v455, %v442
        %v549 = vunpack.c.l.b16 %v547
        %v550 = vunpack.c.h.b16 %v547
        %v551 = vpack.c.b16 %v549, %v549
        %v552 = vpack.c.b16 %v550, %v550
        %553 = vrot.lane.b32.xlu0 %v551, 51
        %v554 = vpop.permute.xlu0 %553
        %555 = vrot.lane.b32.xlu0 %v552, 51
        %v556 = vpop.permute.xlu0 %555
        %vm557 = vcmask 416768
        %v558 = vsel %vm557, %v554, %v556
        %vm559 = vcmask 416768
        %v562 = vsel %vm559, 0, %v554
        %v564 = vsel %vm559, %v556, 0
        %v567 = vrot.slane %v562, 4
        %v568 = vrot.slane %v558, 4
        %v569 = vrot.slane %v564, 4
        %570 = vrot.lane.b32.xlu0 %v567, 112
        %v571 = vpop.permute.xlu0 %570
        %572 = vrot.lane.b32.xlu0 %v568, 112
        %v573 = vpop.permute.xlu0 %572
        %574 = vrot.lane.b32.xlu0 %v569, 112
        %v575 = vpop.permute.xlu0 %574
        %vm576 = vcmask 916480
        %v577 = vsel %vm576, %v571, %v573
        %v578 = vsel %vm576, %v573, %v575
        %579 = vrot.lane.b32.xlu0 %v562, 96
        %v580 = vpop.permute.xlu0 %579
        %581 = vrot.lane.b32.xlu0 %v558, 96
        %v582 = vpop.permute.xlu0 %581
        %583 = vrot.lane.b32.xlu0 %v564, 96
        %v584 = vpop.permute.xlu0 %583
        %vm585 = vcmask 785408
        %v586 = vsel %vm585, %v580, %v582
        %v587 = vsel %vm585, %v582, %v584
        %588 = vrot.lane.b32.xlu0 %v567, 80
        %v589 = vpop.permute.xlu0 %588
        %590 = vrot.lane.b32.xlu0 %v568, 80
        %v591 = vpop.permute.xlu0 %590
        %592 = vrot.lane.b32.xlu0 %v569, 80
        %v593 = vpop.permute.xlu0 %592
        %vm594 = vcmask 654336
        %v595 = vsel %vm594, %v589, %v591
        %v596 = vsel %vm594, %v591, %v593
        %597 = vrot.lane.b32.xlu0 %v562, 64
        %v598 = vpop.permute.xlu0 %597
        %599 = vrot.lane.b32.xlu0 %v558, 64
        %v600 = vpop.permute.xlu0 %599
        %601 = vrot.lane.b32.xlu0 %v564, 64
        %v602 = vpop.permute.xlu0 %601
        %vm603 = vcmask 523264
        %v604 = vsel %vm603, %v598, %v600
        %v605 = vsel %vm603, %v600, %v602
        %606 = vrot.lane.b32.xlu0 %v567, 48
        %v607 = vpop.permute.xlu0 %606
        %608 = vrot.lane.b32.xlu0 %v568, 48
        %v609 = vpop.permute.xlu0 %608
        %610 = vrot.lane.b32.xlu0 %v569, 48
        %v611 = vpop.permute.xlu0 %610
        %vm612 = vcmask 392192
        %v613 = vsel %vm612, %v607, %v609
        %v614 = vsel %vm612, %v609, %v611
        %615 = vrot.lane.b32.xlu0 %v562, 32
        %v616 = vpop.permute.xlu0 %615
        %617 = vrot.lane.b32.xlu0 %v558, 32
        %v618 = vpop.permute.xlu0 %617
        %619 = vrot.lane.b32.xlu0 %v564, 32
        %v620 = vpop.permute.xlu0 %619
        %vm621 = vcmask 261120
        %v622 = vsel %vm621, %v616, %v618
        %v623 = vsel %vm621, %v618, %v620
        %vm626 = vcmask 1043456
        %v628 = vsel %vm626, %v562, %v577
        %v632 = vsel %vm626, %v558, %v578
        %v636 = vsel %vm626, %v586, %v595
        %v640 = vsel %vm626, %v587, %v596
        %v644 = vsel %vm626, %v604, %v613
        %v648 = vsel %vm626, %v605, %v614
        %v651 = vunpack.c.l.b16 %v408
        %v652 = vunpack.c.h.b16 %v408
        %v653 = vpack.c.b16 %v651, %v651
        %v654 = vpack.c.b16 %v652, %v652
        %v656 = vpack.i.b16 %v653, %v653
        %v658 = vperm.slane %v656, 0
        %v660 = vpack.i.b16 %v654, %v654
        %v662 = vperm.slane %v660, 0
        %v663 = vunpack.c.l.bf16 %v628
        %v664 = vunpack.c.l.bf16 %v632
        %v665 = vunpack.c.h.bf16 %v628
        %v666 = vunpack.c.h.bf16 %v632
        %v667 = vunpack.c.l.bf16 %v636
        %v668 = vunpack.c.l.bf16 %v640
        %v669 = vunpack.c.h.bf16 %v636
        %v670 = vunpack.c.h.bf16 %v640
        %v671 = vunpack.c.l.bf16 %v644
        %v672 = vunpack.c.l.bf16 %v648
        %v673 = vunpack.c.h.bf16 %v644
        %v674 = vunpack.c.h.bf16 %v648
        %v675 = vunpack.c.l.bf16 %v622
        %v676 = vunpack.c.l.bf16 %v623
        %v677 = vunpack.c.l.bf16 %v658
        %v678 = vunpack.c.l.bf16 %v662
        %v679 = vmul.f32 %v663, %v677
        %v680 = vmul.f32 %v664, %v678
        %v681 = vmul.f32 %v665, %v677
        %v682 = vmul.f32 %v666, %v678
        %v683 = vmul.f32 %v667, %v677
        %v684 = vmul.f32 %v668, %v678
        %v685 = vmul.f32 %v669, %v677
        %v686 = vmul.f32 %v670, %v678
        %v687 = vmul.f32 %v671, %v677
        %v688 = vmul.f32 %v672, %v678
        %v689 = vmul.f32 %v673, %v677
        %v690 = vmul.f32 %v674, %v678
        %v691 = vmul.f32 %v675, %v677
        %v692 = vmul.f32 %v676, %v678
        %v693 = vpack.c.bf16 %v681, %v679
        %v694 = vpack.c.bf16 %v682, %v680
        %v695 = vpack.c.bf16 %v685, %v683
        %v696 = vpack.c.bf16 %v686, %v684
        %v697 = vpack.c.bf16 %v689, %v687
        %v698 = vpack.c.bf16 %v690, %v688
        %v699 = vpack.c.bf16 %v691, %v691
        %v700 = vpack.c.bf16 %v692, %v692
        %v703 = vsel %vm626, %v564, %v575
        %v707 = vsel %vm626, %v584, %v593
        %v711 = vsel %vm626, %v602, %v611
        %v713 = vshrl.u32 %v653, 16
        %v714 = vpack.i.b16 %v713, %v713
        %v716 = vperm.slane %v714, 0
        %v717 = vshrl.u32 %v654, 16
        %v718 = vpack.i.b16 %v717, %v717
        %v720 = vperm.slane %v718, 0
        %v721 = vunpack.c.l.bf16 %v703
        %v722 = vunpack.c.h.bf16 %v703
        %v723 = vunpack.c.l.bf16 %v707
        %v724 = vunpack.c.h.bf16 %v707
        %v725 = vunpack.c.l.bf16 %v711
        %v726 = vunpack.c.h.bf16 %v711
        %v727 = vunpack.c.l.bf16 %v620
        %v728 = vunpack.c.l.bf16 %v716
        %v729 = vunpack.c.l.bf16 %v720
        %732 = vrot.lane.b32.xlu0 %v728, 1
        %v733 = vpop.permute.xlu0 %732
        %734 = vrot.lane.b32.xlu0 %v729, 1
        %v735 = vpop.permute.xlu0 %734
        %v736 = vsel %vm472, %v733, %v735
        %v740 = vmul.f32 %v663, %v733
        %v741 = vmul.f32 %v664, %v736
        %v742 = vmul.f32 %v721, %v735
        %v743 = vmul.f32 %v665, %v733
        %v744 = vmul.f32 %v666, %v736
        %v745 = vmul.f32 %v722, %v735
        %v746 = vmul.f32 %v667, %v733
        %v747 = vmul.f32 %v668, %v736
        %v748 = vmul.f32 %v723, %v735
        %v749 = vmul.f32 %v669, %v733
        %v750 = vmul.f32 %v670, %v736
        %v751 = vmul.f32 %v724, %v735
        %v752 = vmul.f32 %v671, %v733
        %v753 = vmul.f32 %v672, %v736
        %v754 = vmul.f32 %v725, %v735
        %v755 = vmul.f32 %v673, %v733
        %v756 = vmul.f32 %v674, %v736
        %v757 = vmul.f32 %v726, %v735
        %v758 = vmul.f32 %v675, %v733
        %v759 = vmul.f32 %v676, %v736
        %v760 = vmul.f32 %v727, %v735
        %v761 = vpack.c.bf16 %v743, %v740
        %v762 = vpack.c.bf16 %v744, %v741
        %v763 = vpack.c.bf16 %v745, %v742
        %v764 = vpack.c.bf16 %v749, %v746
        %v765 = vpack.c.bf16 %v750, %v747
        %v766 = vpack.c.bf16 %v751, %v748
        %v767 = vpack.c.bf16 %v755, %v752
        %v768 = vpack.c.bf16 %v756, %v753
        %v769 = vpack.c.bf16 %v757, %v754
        %v770 = vpack.c.bf16 %v758, %v758
        %v771 = vpack.c.bf16 %v759, %v759
        %v772 = vpack.c.bf16 %v760, %v760
        %v774 = vunpack.c.l.b16 %v545
        %v775 = vpack.c.b16 %v774, %v774
        %776 = vrot.lane.b32.xlu0 %v775, 72
        %v777 = vpop.permute.xlu0 %776
        %790 = vrot.lane.b32.xlu0 %v761, 127
        %v791 = vpop.permute.xlu0 %790
        %792 = vrot.lane.b32.xlu0 %v762, 127
        %v793 = vpop.permute.xlu0 %792
        %794 = vrot.lane.b32.xlu0 %v763, 127
        %v795 = vpop.permute.xlu0 %794
        %796 = vrot.lane.b32.xlu0 %v764, 127
        %v797 = vpop.permute.xlu0 %796
        %798 = vrot.lane.b32.xlu0 %v765, 127
        %v799 = vpop.permute.xlu0 %798
        %800 = vrot.lane.b32.xlu0 %v766, 127
        %v801 = vpop.permute.xlu0 %800
        %802 = vrot.lane.b32.xlu0 %v767, 127
        %v803 = vpop.permute.xlu0 %802
        %804 = vrot.lane.b32.xlu0 %v768, 127
        %v805 = vpop.permute.xlu0 %804
        %806 = vrot.lane.b32.xlu0 %v769, 127
        %v807 = vpop.permute.xlu0 %806
        %808 = vrot.lane.b32.xlu0 %v770, 127
        %v809 = vpop.permute.xlu0 %808
        %810 = vrot.lane.b32.xlu0 %v771, 127
        %v811 = vpop.permute.xlu0 %810
        %812 = vrot.lane.b32.xlu0 %v772, 127
        %v813 = vpop.permute.xlu0 %812
        %vm814 = vcmask 1039360
        %v815 = vsel %vm814, %v791, %v793
        %v816 = vsel %vm814, %v793, %v795
        %v817 = vsel %vm814, %v797, %v799
        %v818 = vsel %vm814, %v799, %v801
        %v819 = vsel %vm814, %v803, %v805
        %v820 = vsel %vm814, %v805, %v807
        %v821 = vsel %vm814, %v809, %v811
        %v822 = vsel %vm814, %v811, %v813
        %vm829 = vcmask 457728
        %v831 = vsel %vm829, %v777, 0
        %v834 = vsel %vm626, %v821, 0
        %v837 = vsel %vm626, %v822, 0
        %839 = vmatpush.bf16.msra.mxu0 0
        %840 = vmatpush.bf16.msra.mxu0 0
        %841 = vmatpush.bf16.msra.mxu0 0
        %842 = vmatpush.bf16.msra.mxu0 0
        %843 = vmatpush.bf16.msra.mxu0 %v834
        %844 = vmatpush.bf16.msra.mxu0 %v819
        %845 = vmatpush.bf16.msra.mxu0 %v817
        %846 = vmatpush.bf16.msra.mxu0 %v815
        %847 = vmatmul.bf16.gmra.mxu0 %v831
        %v848 = vpop.f32.mrf.mxu0
        %v849 = vadd.f32 0.0, %v848
        %v850 = vpop.f32.mrf.mxu0
        %851 = vdwg.mxu0
        %852 = vmatpush.bf16.msra.mxu0 0
        %853 = vmatpush.bf16.msra.mxu0 0
        %854 = vmatpush.bf16.msra.mxu0 0
        %855 = vmatpush.bf16.msra.mxu0 0
        %856 = vmatpush.bf16.msra.mxu0 %v837
        %857 = vmatpush.bf16.msra.mxu0 %v820
        %858 = vmatpush.bf16.msra.mxu0 %v818
        %859 = vmatpush.bf16.msra.mxu0 %v816
        %860 = vmatmul.bf16.gmra.mxu0 %v831
        %v861 = vpop.f32.mrf.mxu0
        %v862 = vadd.f32 0.0, %v861
        %v863 = vpop.f32.mrf.mxu0
        %864 = vdwg.mxu0
        %v866 = vsel %vm829, %v545, 0
        %v869 = vsel %vm626, %v699, 0
        %v872 = vsel %vm626, %v700, 0
        %874 = vmatpush.bf16.msra.mxu0 0
        %875 = vmatpush.bf16.msra.mxu0 0
        %876 = vmatpush.bf16.msra.mxu0 0
        %877 = vmatpush.bf16.msra.mxu0 0
        %878 = vmatpush.bf16.msra.mxu0 %v869
        %879 = vmatpush.bf16.msra.mxu0 %v697
        %880 = vmatpush.bf16.msra.mxu0 %v695
        %881 = vmatpush.bf16.msra.mxu0 %v693
        %882 = vmatmul.bf16.gmra.mxu0 %v866
        %v883 = vpop.f32.mrf.mxu0
        %v884 = vadd.f32 %v849, %v883
        %v885 = vpop.f32.mrf.mxu0
        %886 = vdwg.mxu0
        %887 = vmatpush.bf16.msra.mxu0 0
        %888 = vmatpush.bf16.msra.mxu0 0
        %889 = vmatpush.bf16.msra.mxu0 0
        %890 = vmatpush.bf16.msra.mxu0 0
        %891 = vmatpush.bf16.msra.mxu0 %v872
        %892 = vmatpush.bf16.msra.mxu0 %v698
        %893 = vmatpush.bf16.msra.mxu0 %v696
        %894 = vmatpush.bf16.msra.mxu0 %v694
        %895 = vmatmul.bf16.gmra.mxu0 %v866
        %v896 = vpop.f32.mrf.mxu0
        %v897 = vadd.f32 %v862, %v896
        %v898 = vpop.f32.mrf.mxu0
        %899 = vdwg.mxu0
        %v900 = vperm.slane %v656, 1
        %v901 = vperm.slane %v660, 1
        %v902 = vunpack.c.l.bf16 %v900
        %v903 = vunpack.c.l.bf16 %v901
        %906 = vrot.lane.b32.xlu0 %v902, 2
        %v907 = vpop.permute.xlu0 %906
        %908 = vrot.lane.b32.xlu0 %v903, 2
        %v909 = vpop.permute.xlu0 %908
        %v910 = vsel %vm501, %v907, %v909
        %v914 = vmul.f32 %v663, %v907
        %v915 = vmul.f32 %v664, %v910
        %v916 = vmul.f32 %v721, %v909
        %v917 = vmul.f32 %v665, %v907
        %v918 = vmul.f32 %v666, %v910
        %v919 = vmul.f32 %v722, %v909
        %v920 = vmul.f32 %v667, %v907
        %v921 = vmul.f32 %v668, %v910
        %v922 = vmul.f32 %v723, %v909
        %v923 = vmul.f32 %v669, %v907
        %v924 = vmul.f32 %v670, %v910
        %v925 = vmul.f32 %v724, %v909
        %v926 = vmul.f32 %v671, %v907
        %v927 = vmul.f32 %v672, %v910
        %v928 = vmul.f32 %v725, %v909
        %v929 = vmul.f32 %v673, %v907
        %v930 = vmul.f32 %v674, %v910
        %v931 = vmul.f32 %v726, %v909
        %v932 = vmul.f32 %v675, %v907
        %v933 = vmul.f32 %v676, %v910
        %v934 = vmul.f32 %v727, %v909
        %v935 = vpack.c.bf16 %v917, %v914
        %v936 = vpack.c.bf16 %v918, %v915
        %v937 = vpack.c.bf16 %v919, %v916
        %v938 = vpack.c.bf16 %v923, %v920
        %v939 = vpack.c.bf16 %v924, %v921
        %v940 = vpack.c.bf16 %v925, %v922
        %v941 = vpack.c.bf16 %v929, %v926
        %v942 = vpack.c.bf16 %v930, %v927
        %v943 = vpack.c.bf16 %v931, %v928
        %v944 = vpack.c.bf16 %v932, %v932
        %v945 = vpack.c.bf16 %v933, %v933
        %v946 = vpack.c.bf16 %v934, %v934
        %v947 = vunpack.c.h.b16 %v545
        %v948 = vpack.c.b16 %v947, %v947
        %949 = vrot.lane.b32.xlu0 %v775, 16
        %v950 = vpop.permute.xlu0 %949
        %951 = vrot.lane.b32.xlu0 %v948, 16
        %v952 = vpop.permute.xlu0 %951
        %vm953 = vcmask 130048
        %v954 = vsel %vm953, %v950, %v952
        %967 = vrot.lane.b32.xlu0 %v935, 126
        %v968 = vpop.permute.xlu0 %967
        %969 = vrot.lane.b32.xlu0 %v936, 126
        %v970 = vpop.permute.xlu0 %969
        %971 = vrot.lane.b32.xlu0 %v937, 126
        %v972 = vpop.permute.xlu0 %971
        %973 = vrot.lane.b32.xlu0 %v938, 126
        %v974 = vpop.permute.xlu0 %973
        %975 = vrot.lane.b32.xlu0 %v939, 126
        %v976 = vpop.permute.xlu0 %975
        %977 = vrot.lane.b32.xlu0 %v940, 126
        %v978 = vpop.permute.xlu0 %977
        %979 = vrot.lane.b32.xlu0 %v941, 126
        %v980 = vpop.permute.xlu0 %979
        %981 = vrot.lane.b32.xlu0 %v942, 126
        %v982 = vpop.permute.xlu0 %981
        %983 = vrot.lane.b32.xlu0 %v943, 126
        %v984 = vpop.permute.xlu0 %983
        %985 = vrot.lane.b32.xlu0 %v944, 126
        %v986 = vpop.permute.xlu0 %985
        %987 = vrot.lane.b32.xlu0 %v945, 126
        %v988 = vpop.permute.xlu0 %987
        %989 = vrot.lane.b32.xlu0 %v946, 126
        %v990 = vpop.permute.xlu0 %989
        %vm991 = vcmask 1031168
        %v992 = vsel %vm991, %v968, %v970
        %v993 = vsel %vm991, %v970, %v972
        %v994 = vsel %vm991, %v974, %v976
        %v995 = vsel %vm991, %v976, %v978
        %v996 = vsel %vm991, %v980, %v982
        %v997 = vsel %vm991, %v982, %v984
        %v998 = vsel %vm991, %v986, %v988
        %v999 = vsel %vm991, %v988, %v990
        %v1007 = vsel %vm829, %v954, 0
        %v1010 = vsel %vm626, %v998, 0
        %v1013 = vsel %vm626, %v999, 0
        %1015 = vmatpush.bf16.msra.mxu0 0
        %1016 = vmatpush.bf16.msra.mxu0 0
        %1017 = vmatpush.bf16.msra.mxu0 0
        %1018 = vmatpush.bf16.msra.mxu0 0
        %1019 = vmatpush.bf16.msra.mxu0 %v1010
        %1020 = vmatpush.bf16.msra.mxu0 %v996
        %1021 = vmatpush.bf16.msra.mxu0 %v994
        %1022 = vmatpush.bf16.msra.mxu0 %v992
        %1023 = vmatmul.bf16.gmra.mxu0 %v1007
        %v1024 = vpop.f32.mrf.mxu0
        %v1025 = vadd.f32 0.0, %v1024
        %v1026 = vpop.f32.mrf.mxu0
        %1027 = vdwg.mxu0
        %1028 = vmatpush.bf16.msra.mxu0 0
        %1029 = vmatpush.bf16.msra.mxu0 0
        %1030 = vmatpush.bf16.msra.mxu0 0
        %1031 = vmatpush.bf16.msra.mxu0 0
        %1032 = vmatpush.bf16.msra.mxu0 %v1013
        %1033 = vmatpush.bf16.msra.mxu0 %v997
        %1034 = vmatpush.bf16.msra.mxu0 %v995
        %1035 = vmatpush.bf16.msra.mxu0 %v993
        %1036 = vmatmul.bf16.gmra.mxu0 %v1007
        %v1037 = vpop.f32.mrf.mxu0
        %v1038 = vadd.f32 0.0, %v1037
        %v1039 = vpop.f32.mrf.mxu0
        %1040 = vdwg.mxu0
        %v1041 = vadd.f32 %v884, %v1025
        %v1042 = vadd.f32 %v897, %v1038
        %v1043 = vperm.slane %v714, 1
        %v1044 = vperm.slane %v718, 1
        %v1045 = vunpack.c.l.bf16 %v1043
        %v1046 = vunpack.c.l.bf16 %v1044
        %1049 = vrot.lane.b32.xlu0 %v1045, 3
        %v1050 = vpop.permute.xlu0 %1049
        %1051 = vrot.lane.b32.xlu0 %v1046, 3
        %v1052 = vpop.permute.xlu0 %1051
        %vm1053 = vcmask 23552
        %v1054 = vsel %vm1053, %v1050, %v1052
        %v1058 = vmul.f32 %v663, %v1050
        %v1059 = vmul.f32 %v664, %v1054
        %v1060 = vmul.f32 %v721, %v1052
        %v1061 = vmul.f32 %v665, %v1050
        %v1062 = vmul.f32 %v666, %v1054
        %v1063 = vmul.f32 %v722, %v1052
        %v1064 = vmul.f32 %v667, %v1050
        %v1065 = vmul.f32 %v668, %v1054
        %v1066 = vmul.f32 %v723, %v1052
        %v1067 = vmul.f32 %v669, %v1050
        %v1068 = vmul.f32 %v670, %v1054
        %v1069 = vmul.f32 %v724, %v1052
        %v1070 = vmul.f32 %v671, %v1050
        %v1071 = vmul.f32 %v672, %v1054
        %v1072 = vmul.f32 %v725, %v1052
        %v1073 = vmul.f32 %v673, %v1050
        %v1074 = vmul.f32 %v674, %v1054
        %v1075 = vmul.f32 %v726, %v1052
        %v1076 = vmul.f32 %v675, %v1050
        %v1077 = vmul.f32 %v676, %v1054
        %v1078 = vmul.f32 %v727, %v1052
        %v1079 = vpack.c.bf16 %v1061, %v1058
        %v1080 = vpack.c.bf16 %v1062, %v1059
        %v1081 = vpack.c.bf16 %v1063, %v1060
        %v1082 = vpack.c.bf16 %v1067, %v1064
        %v1083 = vpack.c.bf16 %v1068, %v1065
        %v1084 = vpack.c.bf16 %v1069, %v1066
        %v1085 = vpack.c.bf16 %v1073, %v1070
        %v1086 = vpack.c.bf16 %v1074, %v1071
        %v1087 = vpack.c.bf16 %v1075, %v1072
        %v1088 = vpack.c.bf16 %v1076, %v1076
        %v1089 = vpack.c.bf16 %v1077, %v1077
        %v1090 = vpack.c.bf16 %v1078, %v1078
        %1091 = vrot.lane.b32.xlu0 %v948, 88
        %v1092 = vpop.permute.xlu0 %1091
        %1105 = vrot.lane.b32.xlu0 %v1079, 125
        %v1106 = vpop.permute.xlu0 %1105
        %1107 = vrot.lane.b32.xlu0 %v1080, 125
        %v1108 = vpop.permute.xlu0 %1107
        %1109 = vrot.lane.b32.xlu0 %v1081, 125
        %v1110 = vpop.permute.xlu0 %1109
        %1111 = vrot.lane.b32.xlu0 %v1082, 125
        %v1112 = vpop.permute.xlu0 %1111
        %1113 = vrot.lane.b32.xlu0 %v1083, 125
        %v1114 = vpop.permute.xlu0 %1113
        %1115 = vrot.lane.b32.xlu0 %v1084, 125
        %v1116 = vpop.permute.xlu0 %1115
        %1117 = vrot.lane.b32.xlu0 %v1085, 125
        %v1118 = vpop.permute.xlu0 %1117
        %1119 = vrot.lane.b32.xlu0 %v1086, 125
        %v1120 = vpop.permute.xlu0 %1119
        %1121 = vrot.lane.b32.xlu0 %v1087, 125
        %v1122 = vpop.permute.xlu0 %1121
        %1123 = vrot.lane.b32.xlu0 %v1088, 125
        %v1124 = vpop.permute.xlu0 %1123
        %1125 = vrot.lane.b32.xlu0 %v1089, 125
        %v1126 = vpop.permute.xlu0 %1125
        %1127 = vrot.lane.b32.xlu0 %v1090, 125
        %v1128 = vpop.permute.xlu0 %1127
        %vm1129 = vcmask 1022976
        %v1130 = vsel %vm1129, %v1106, %v1108
        %v1131 = vsel %vm1129, %v1108, %v1110
        %v1132 = vsel %vm1129, %v1112, %v1114
        %v1133 = vsel %vm1129, %v1114, %v1116
        %v1134 = vsel %vm1129, %v1118, %v1120
        %v1135 = vsel %vm1129, %v1120, %v1122
        %v1136 = vsel %vm1129, %v1124, %v1126
        %v1137 = vsel %vm1129, %v1126, %v1128
        %v1145 = vsel %vm829, %v1092, 0
        %v1148 = vsel %vm626, %v1136, 0
        %v1151 = vsel %vm626, %v1137, 0
        %1153 = vmatpush.bf16.msra.mxu0 0
        %1154 = vmatpush.bf16.msra.mxu0 0
        %1155 = vmatpush.bf16.msra.mxu0 0
        %1156 = vmatpush.bf16.msra.mxu0 0
        %1157 = vmatpush.bf16.msra.mxu0 %v1148
        %1158 = vmatpush.bf16.msra.mxu0 %v1134
        %1159 = vmatpush.bf16.msra.mxu0 %v1132
        %1160 = vmatpush.bf16.msra.mxu0 %v1130
        %1161 = vmatmul.bf16.gmra.mxu0 %v1145
        %v1162 = vpop.f32.mrf.mxu0
        %v1163 = vadd.f32 0.0, %v1162
        %v1164 = vpop.f32.mrf.mxu0
        %1165 = vdwg.mxu0
        %1166 = vmatpush.bf16.msra.mxu0 0
        %1167 = vmatpush.bf16.msra.mxu0 0
        %1168 = vmatpush.bf16.msra.mxu0 0
        %1169 = vmatpush.bf16.msra.mxu0 0
        %1170 = vmatpush.bf16.msra.mxu0 %v1151
        %1171 = vmatpush.bf16.msra.mxu0 %v1135
        %1172 = vmatpush.bf16.msra.mxu0 %v1133
        %1173 = vmatpush.bf16.msra.mxu0 %v1131
        %1174 = vmatmul.bf16.gmra.mxu0 %v1145
        %v1175 = vpop.f32.mrf.mxu0
        %v1176 = vadd.f32 0.0, %v1175
        %v1177 = vpop.f32.mrf.mxu0
        %1178 = vdwg.mxu0
        %v1179 = vadd.f32 %v1041, %v1163
        %v1180 = vadd.f32 %v1042, %v1176
        %v1181 = vperm.slane %v656, 2
        %v1182 = vperm.slane %v660, 2
        %v1183 = vunpack.c.l.bf16 %v1181
        %v1184 = vunpack.c.l.bf16 %v1182
        %1187 = vrot.lane.b32.xlu0 %v1183, 4
        %v1188 = vpop.permute.xlu0 %1187
        %1189 = vrot.lane.b32.xlu0 %v1184, 4
        %v1190 = vpop.permute.xlu0 %1189
        %vm1191 = vcmask 31744
        %v1192 = vsel %vm1191, %v1188, %v1190
        %v1196 = vmul.f32 %v663, %v1188
        %v1197 = vmul.f32 %v664, %v1192
        %v1198 = vmul.f32 %v721, %v1190
        %v1199 = vmul.f32 %v665, %v1188
        %v1200 = vmul.f32 %v666, %v1192
        %v1201 = vmul.f32 %v722, %v1190
        %v1202 = vmul.f32 %v667, %v1188
        %v1203 = vmul.f32 %v668, %v1192
        %v1204 = vmul.f32 %v723, %v1190
        %v1205 = vmul.f32 %v669, %v1188
        %v1206 = vmul.f32 %v670, %v1192
        %v1207 = vmul.f32 %v724, %v1190
        %v1208 = vmul.f32 %v671, %v1188
        %v1209 = vmul.f32 %v672, %v1192
        %v1210 = vmul.f32 %v725, %v1190
        %v1211 = vmul.f32 %v673, %v1188
        %v1212 = vmul.f32 %v674, %v1192
        %v1213 = vmul.f32 %v726, %v1190
        %v1214 = vmul.f32 %v675, %v1188
        %v1215 = vmul.f32 %v676, %v1192
        %v1216 = vmul.f32 %v727, %v1190
        %v1217 = vpack.c.bf16 %v1199, %v1196
        %v1218 = vpack.c.bf16 %v1200, %v1197
        %v1219 = vpack.c.bf16 %v1201, %v1198
        %v1220 = vpack.c.bf16 %v1205, %v1202
        %v1221 = vpack.c.bf16 %v1206, %v1203
        %v1222 = vpack.c.bf16 %v1207, %v1204
        %v1223 = vpack.c.bf16 %v1211, %v1208
        %v1224 = vpack.c.bf16 %v1212, %v1209
        %v1225 = vpack.c.bf16 %v1213, %v1210
        %v1226 = vpack.c.bf16 %v1214, %v1214
        %v1227 = vpack.c.bf16 %v1215, %v1215
        %v1228 = vpack.c.bf16 %v1216, %v1216
        %v1230 = vunpack.c.l.b16 %v546
        %v1231 = vpack.c.b16 %v1230, %v1230
        %1232 = vrot.lane.b32.xlu0 %v948, 32
        %v1233 = vpop.permute.xlu0 %1232
        %1234 = vrot.lane.b32.xlu0 %v1231, 32
        %v1235 = vpop.permute.xlu0 %1234
        %v1236 = vsel %vm621, %v1233, %v1235
        %1249 = vrot.lane.b32.xlu0 %v1217, 124
        %v1250 = vpop.permute.xlu0 %1249
        %1251 = vrot.lane.b32.xlu0 %v1218, 124
        %v1252 = vpop.permute.xlu0 %1251
        %1253 = vrot.lane.b32.xlu0 %v1219, 124
        %v1254 = vpop.permute.xlu0 %1253
        %1255 = vrot.lane.b32.xlu0 %v1220, 124
        %v1256 = vpop.permute.xlu0 %1255
        %1257 = vrot.lane.b32.xlu0 %v1221, 124
        %v1258 = vpop.permute.xlu0 %1257
        %1259 = vrot.lane.b32.xlu0 %v1222, 124
        %v1260 = vpop.permute.xlu0 %1259
        %1261 = vrot.lane.b32.xlu0 %v1223, 124
        %v1262 = vpop.permute.xlu0 %1261
        %1263 = vrot.lane.b32.xlu0 %v1224, 124
        %v1264 = vpop.permute.xlu0 %1263
        %1265 = vrot.lane.b32.xlu0 %v1225, 124
        %v1266 = vpop.permute.xlu0 %1265
        %1267 = vrot.lane.b32.xlu0 %v1226, 124
        %v1268 = vpop.permute.xlu0 %1267
        %1269 = vrot.lane.b32.xlu0 %v1227, 124
        %v1270 = vpop.permute.xlu0 %1269
        %1271 = vrot.lane.b32.xlu0 %v1228, 124
        %v1272 = vpop.permute.xlu0 %1271
        %vm1273 = vcmask 1014784
        %v1274 = vsel %vm1273, %v1250, %v1252
        %v1275 = vsel %vm1273, %v1252, %v1254
        %v1276 = vsel %vm1273, %v1256, %v1258
        %v1277 = vsel %vm1273, %v1258, %v1260
        %v1278 = vsel %vm1273, %v1262, %v1264
        %v1279 = vsel %vm1273, %v1264, %v1266
        %v1280 = vsel %vm1273, %v1268, %v1270
        %v1281 = vsel %vm1273, %v1270, %v1272
        %v1289 = vsel %vm829, %v1236, 0
        %v1292 = vsel %vm626, %v1280, 0
        %v1295 = vsel %vm626, %v1281, 0
        %1297 = vmatpush.bf16.msra.mxu0 0
        %1298 = vmatpush.bf16.msra.mxu0 0
        %1299 = vmatpush.bf16.msra.mxu0 0
        %1300 = vmatpush.bf16.msra.mxu0 0
        %1301 = vmatpush.bf16.msra.mxu0 %v1292
        %1302 = vmatpush.bf16.msra.mxu0 %v1278
        %1303 = vmatpush.bf16.msra.mxu0 %v1276
        %1304 = vmatpush.bf16.msra.mxu0 %v1274
        %1305 = vmatmul.bf16.gmra.mxu0 %v1289
        %v1306 = vpop.f32.mrf.mxu0
        %v1307 = vadd.f32 0.0, %v1306
        %v1308 = vpop.f32.mrf.mxu0
        %1309 = vdwg.mxu0
        %1310 = vmatpush.bf16.msra.mxu0 0
        %1311 = vmatpush.bf16.msra.mxu0 0
        %1312 = vmatpush.bf16.msra.mxu0 0
        %1313 = vmatpush.bf16.msra.mxu0 0
        %1314 = vmatpush.bf16.msra.mxu0 %v1295
        %1315 = vmatpush.bf16.msra.mxu0 %v1279
        %1316 = vmatpush.bf16.msra.mxu0 %v1277
        %1317 = vmatpush.bf16.msra.mxu0 %v1275
        %1318 = vmatmul.bf16.gmra.mxu0 %v1289
        %v1319 = vpop.f32.mrf.mxu0
        %v1320 = vadd.f32 0.0, %v1319
        %v1321 = vpop.f32.mrf.mxu0
        %1322 = vdwg.mxu0
        %v1323 = vadd.f32 %v1179, %v1307
        %v1324 = vadd.f32 %v1180, %v1320
        %v1325 = vperm.slane %v714, 2
        %v1326 = vperm.slane %v718, 2
        %v1327 = vunpack.c.l.bf16 %v1325
        %v1328 = vunpack.c.l.bf16 %v1326
        %1331 = vrot.lane.b32.xlu0 %v1327, 5
        %v1332 = vpop.permute.xlu0 %1331
        %1333 = vrot.lane.b32.xlu0 %v1328, 5
        %v1334 = vpop.permute.xlu0 %1333
        %vm1335 = vcmask 39936
        %v1336 = vsel %vm1335, %v1332, %v1334
        %v1340 = vmul.f32 %v663, %v1332
        %v1341 = vmul.f32 %v664, %v1336
        %v1342 = vmul.f32 %v721, %v1334
        %v1343 = vmul.f32 %v665, %v1332
        %v1344 = vmul.f32 %v666, %v1336
        %v1345 = vmul.f32 %v722, %v1334
        %v1346 = vmul.f32 %v667, %v1332
        %v1347 = vmul.f32 %v668, %v1336
        %v1348 = vmul.f32 %v723, %v1334
        %v1349 = vmul.f32 %v669, %v1332
        %v1350 = vmul.f32 %v670, %v1336
        %v1351 = vmul.f32 %v724, %v1334
        %v1352 = vmul.f32 %v671, %v1332
        %v1353 = vmul.f32 %v672, %v1336
        %v1354 = vmul.f32 %v725, %v1334
        %v1355 = vmul.f32 %v673, %v1332
        %v1356 = vmul.f32 %v674, %v1336
        %v1357 = vmul.f32 %v726, %v1334
        %v1358 = vmul.f32 %v675, %v1332
        %v1359 = vmul.f32 %v676, %v1336
        %v1360 = vmul.f32 %v727, %v1334
        %v1361 = vpack.c.bf16 %v1343, %v1340
        %v1362 = vpack.c.bf16 %v1344, %v1341
        %v1363 = vpack.c.bf16 %v1345, %v1342
        %v1364 = vpack.c.bf16 %v1349, %v1346
        %v1365 = vpack.c.bf16 %v1350, %v1347
        %v1366 = vpack.c.bf16 %v1351, %v1348
        %v1367 = vpack.c.bf16 %v1355, %v1352
        %v1368 = vpack.c.bf16 %v1356, %v1353
        %v1369 = vpack.c.bf16 %v1357, %v1354
        %v1370 = vpack.c.bf16 %v1358, %v1358
        %v1371 = vpack.c.bf16 %v1359, %v1359
        %v1372 = vpack.c.bf16 %v1360, %v1360
        %1373 = vrot.lane.b32.xlu0 %v1231, 104
        %v1374 = vpop.permute.xlu0 %1373
        %1387 = vrot.lane.b32.xlu0 %v1361, 123
        %v1388 = vpop.permute.xlu0 %1387
        %1389 = vrot.lane.b32.xlu0 %v1362, 123
        %v1390 = vpop.permute.xlu0 %1389
        %1391 = vrot.lane.b32.xlu0 %v1363, 123
        %v1392 = vpop.permute.xlu0 %1391
        %1393 = vrot.lane.b32.xlu0 %v1364, 123
        %v1394 = vpop.permute.xlu0 %1393
        %1395 = vrot.lane.b32.xlu0 %v1365, 123
        %v1396 = vpop.permute.xlu0 %1395
        %1397 = vrot.lane.b32.xlu0 %v1366, 123
        %v1398 = vpop.permute.xlu0 %1397
        %1399 = vrot.lane.b32.xlu0 %v1367, 123
        %v1400 = vpop.permute.xlu0 %1399
        %1401 = vrot.lane.b32.xlu0 %v1368, 123
        %v1402 = vpop.permute.xlu0 %1401
        %1403 = vrot.lane.b32.xlu0 %v1369, 123
        %v1404 = vpop.permute.xlu0 %1403
        %1405 = vrot.lane.b32.xlu0 %v1370, 123
        %v1406 = vpop.permute.xlu0 %1405
        %1407 = vrot.lane.b32.xlu0 %v1371, 123
        %v1408 = vpop.permute.xlu0 %1407
        %1409 = vrot.lane.b32.xlu0 %v1372, 123
        %v1410 = vpop.permute.xlu0 %1409
        %vm1411 = vcmask 1006592
        %v1412 = vsel %vm1411, %v1388, %v1390
        %v1413 = vsel %vm1411, %v1390, %v1392
        %v1414 = vsel %vm1411, %v1394, %v1396
        %v1415 = vsel %vm1411, %v1396, %v1398
        %v1416 = vsel %vm1411, %v1400, %v1402
        %v1417 = vsel %vm1411, %v1402, %v1404
        %v1418 = vsel %vm1411, %v1406, %v1408
        %v1419 = vsel %vm1411, %v1408, %v1410
        %v1427 = vsel %vm829, %v1374, 0
        %v1430 = vsel %vm626, %v1418, 0
        %v1433 = vsel %vm626, %v1419, 0
        %1435 = vmatpush.bf16.msra.mxu0 0
        %1436 = vmatpush.bf16.msra.mxu0 0
        %1437 = vmatpush.bf16.msra.mxu0 0
        %1438 = vmatpush.bf16.msra.mxu0 0
        %1439 = vmatpush.bf16.msra.mxu0 %v1430
        %1440 = vmatpush.bf16.msra.mxu0 %v1416
        %1441 = vmatpush.bf16.msra.mxu0 %v1414
        %1442 = vmatpush.bf16.msra.mxu0 %v1412
        %1443 = vmatmul.bf16.gmra.mxu0 %v1427
        %v1444 = vpop.f32.mrf.mxu0
        %v1445 = vadd.f32 0.0, %v1444
        %v1446 = vpop.f32.mrf.mxu0
        %1447 = vdwg.mxu0
        %1448 = vmatpush.bf16.msra.mxu0 0
        %1449 = vmatpush.bf16.msra.mxu0 0
        %1450 = vmatpush.bf16.msra.mxu0 0
        %1451 = vmatpush.bf16.msra.mxu0 0
        %1452 = vmatpush.bf16.msra.mxu0 %v1433
        %1453 = vmatpush.bf16.msra.mxu0 %v1417
        %1454 = vmatpush.bf16.msra.mxu0 %v1415
        %1455 = vmatpush.bf16.msra.mxu0 %v1413
        %1456 = vmatmul.bf16.gmra.mxu0 %v1427
        %v1457 = vpop.f32.mrf.mxu0
        %v1458 = vadd.f32 0.0, %v1457
        %v1459 = vpop.f32.mrf.mxu0
        %1460 = vdwg.mxu0
        %v1461 = vadd.f32 %v1323, %v1445
        %v1462 = vadd.f32 %v1324, %v1458
        %v1463 = vperm.slane %v656, 3
        %v1464 = vperm.slane %v660, 3
        %v1465 = vunpack.c.l.bf16 %v1463
        %v1466 = vunpack.c.l.bf16 %v1464
        %1469 = vrot.lane.b32.xlu0 %v1465, 6
        %v1470 = vpop.permute.xlu0 %1469
        %1471 = vrot.lane.b32.xlu0 %v1466, 6
        %v1472 = vpop.permute.xlu0 %1471
        %vm1473 = vcmask 48128
        %v1474 = vsel %vm1473, %v1470, %v1472
        %v1478 = vmul.f32 %v663, %v1470
        %v1479 = vmul.f32 %v664, %v1474
        %v1480 = vmul.f32 %v721, %v1472
        %v1481 = vmul.f32 %v665, %v1470
        %v1482 = vmul.f32 %v666, %v1474
        %v1483 = vmul.f32 %v722, %v1472
        %v1484 = vmul.f32 %v667, %v1470
        %v1485 = vmul.f32 %v668, %v1474
        %v1486 = vmul.f32 %v723, %v1472
        %v1487 = vmul.f32 %v669, %v1470
        %v1488 = vmul.f32 %v670, %v1474
        %v1489 = vmul.f32 %v724, %v1472
        %v1490 = vmul.f32 %v671, %v1470
        %v1491 = vmul.f32 %v672, %v1474
        %v1492 = vmul.f32 %v725, %v1472
        %v1493 = vmul.f32 %v673, %v1470
        %v1494 = vmul.f32 %v674, %v1474
        %v1495 = vmul.f32 %v726, %v1472
        %v1496 = vmul.f32 %v675, %v1470
        %v1497 = vmul.f32 %v676, %v1474
        %v1498 = vmul.f32 %v727, %v1472
        %v1499 = vpack.c.bf16 %v1481, %v1478
        %v1500 = vpack.c.bf16 %v1482, %v1479
        %v1501 = vpack.c.bf16 %v1483, %v1480
        %v1502 = vpack.c.bf16 %v1487, %v1484
        %v1503 = vpack.c.bf16 %v1488, %v1485
        %v1504 = vpack.c.bf16 %v1489, %v1486
        %v1505 = vpack.c.bf16 %v1493, %v1490
        %v1506 = vpack.c.bf16 %v1494, %v1491
        %v1507 = vpack.c.bf16 %v1495, %v1492
        %v1508 = vpack.c.bf16 %v1496, %v1496
        %v1509 = vpack.c.bf16 %v1497, %v1497
        %v1510 = vpack.c.bf16 %v1498, %v1498
        %v1511 = vunpack.c.h.b16 %v546
        %v1512 = vpack.c.b16 %v1511, %v1511
        %1513 = vrot.lane.b32.xlu0 %v1231, 48
        %v1514 = vpop.permute.xlu0 %1513
        %1515 = vrot.lane.b32.xlu0 %v1512, 48
        %v1516 = vpop.permute.xlu0 %1515
        %v1517 = vsel %vm612, %v1514, %v1516
        %1530 = vrot.lane.b32.xlu0 %v1499, 122
        %v1531 = vpop.permute.xlu0 %1530
        %1532 = vrot.lane.b32.xlu0 %v1500, 122
        %v1533 = vpop.permute.xlu0 %1532
        %1534 = vrot.lane.b32.xlu0 %v1501, 122
        %v1535 = vpop.permute.xlu0 %1534
        %1536 = vrot.lane.b32.xlu0 %v1502, 122
        %v1537 = vpop.permute.xlu0 %1536
        %1538 = vrot.lane.b32.xlu0 %v1503, 122
        %v1539 = vpop.permute.xlu0 %1538
        %1540 = vrot.lane.b32.xlu0 %v1504, 122
        %v1541 = vpop.permute.xlu0 %1540
        %1542 = vrot.lane.b32.xlu0 %v1505, 122
        %v1543 = vpop.permute.xlu0 %1542
        %1544 = vrot.lane.b32.xlu0 %v1506, 122
        %v1545 = vpop.permute.xlu0 %1544
        %1546 = vrot.lane.b32.xlu0 %v1507, 122
        %v1547 = vpop.permute.xlu0 %1546
        %1548 = vrot.lane.b32.xlu0 %v1508, 122
        %v1549 = vpop.permute.xlu0 %1548
        %1550 = vrot.lane.b32.xlu0 %v1509, 122
        %v1551 = vpop.permute.xlu0 %1550
        %1552 = vrot.lane.b32.xlu0 %v1510, 122
        %v1553 = vpop.permute.xlu0 %1552
        %vm1554 = vcmask 998400
        %v1555 = vsel %vm1554, %v1531, %v1533
        %v1556 = vsel %vm1554, %v1533, %v1535
        %v1557 = vsel %vm1554, %v1537, %v1539
        %v1558 = vsel %vm1554, %v1539, %v1541
        %v1559 = vsel %vm1554, %v1543, %v1545
        %v1560 = vsel %vm1554, %v1545, %v1547
        %v1561 = vsel %vm1554, %v1549, %v1551
        %v1562 = vsel %vm1554, %v1551, %v1553
        %v1570 = vsel %vm829, %v1517, 0
        %v1573 = vsel %vm626, %v1561, 0
        %v1576 = vsel %vm626, %v1562, 0
        %1578 = vmatpush.bf16.msra.mxu0 0
        %1579 = vmatpush.bf16.msra.mxu0 0
        %1580 = vmatpush.bf16.msra.mxu0 0
        %1581 = vmatpush.bf16.msra.mxu0 0
        %1582 = vmatpush.bf16.msra.mxu0 %v1573
        %1583 = vmatpush.bf16.msra.mxu0 %v1559
        %1584 = vmatpush.bf16.msra.mxu0 %v1557
        %1585 = vmatpush.bf16.msra.mxu0 %v1555
        %1586 = vmatmul.bf16.gmra.mxu0 %v1570
        %v1587 = vpop.f32.mrf.mxu0
        %v1588 = vadd.f32 0.0, %v1587
        %v1589 = vpop.f32.mrf.mxu0
        %1590 = vdwg.mxu0
        %1591 = vmatpush.bf16.msra.mxu0 0
        %1592 = vmatpush.bf16.msra.mxu0 0
        %1593 = vmatpush.bf16.msra.mxu0 0
        %1594 = vmatpush.bf16.msra.mxu0 0
        %1595 = vmatpush.bf16.msra.mxu0 %v1576
        %1596 = vmatpush.bf16.msra.mxu0 %v1560
        %1597 = vmatpush.bf16.msra.mxu0 %v1558
        %1598 = vmatpush.bf16.msra.mxu0 %v1556
        %1599 = vmatmul.bf16.gmra.mxu0 %v1570
        %v1600 = vpop.f32.mrf.mxu0
        %v1601 = vadd.f32 0.0, %v1600
        %v1602 = vpop.f32.mrf.mxu0
        %1603 = vdwg.mxu0
        %v1604 = vadd.f32 %v1461, %v1588
        %v1605 = vadd.f32 %v1462, %v1601
        %v1606 = vld [vmem:[%s5] sm:$0xff]
        %1608 = vset.pattern.permute.xlu0 0
        %1609 = vperm.xlu0 %1608, %v1606
        %v1610 = vpop.permute.xlu0 %1609
        %v1612 = vadd.f32 %v1604, %v1610
        %v1613 = vadd.f32 %v1605, %v1610
        %v1614 = vrot.slane %v1612, 4
        %v1615 = vadd.f32 %v1612, %v1614
        %v1616 = vrot.slane %v1615, 2
        %v1617 = vadd.f32 %v1615, %v1616
        %v1618 = vrot.slane %v1617, 1
        %v1619 = vadd.f32 %v1617, %v1618
        %v1620 = vrot.slane %v1613, 4
        %v1621 = vadd.f32 %v1613, %v1620
        %v1622 = vrot.slane %v1621, 2
        %v1623 = vadd.f32 %v1621, %v1622
        %v1624 = vrot.slane %v1623, 1
        %v1625 = vadd.f32 %v1623, %v1624
        %v1626 = vrcp.pop 8.0
        %v1627 = vmul.f32 8.0, %v1626
        %v1628 = vsub.f32 1.0, %v1627
        %v1629 = vmul.f32 %v1626, %v1628
        %v1630 = vadd.f32 %v1626, %v1629
        %vm1631 = vweird.f32 %v1626
        %v1632 = vsel %vm1631, %v1626, %v1630
        %v1633 = vmul.f32 %v1619, %v1632
        %v1634 = vmul.f32 %v1625, %v1632
        %v1635 = vrot.slane %v1612, 4
        %v1636 = vmax.f32 %v1612, %v1635
        %v1637 = vrot.slane %v1636, 2
        %v1638 = vmax.f32 %v1636, %v1637
        %v1639 = vrot.slane %v1638, 1
        %v1640 = vmax.f32 %v1638, %v1639
        %v1641 = vrot.slane %v1613, 4
        %v1642 = vmax.f32 %v1613, %v1641
        %v1643 = vrot.slane %v1642, 2
        %v1644 = vmax.f32 %v1642, %v1643
        %v1645 = vrot.slane %v1644, 1
        %v1646 = vmax.f32 %v1644, %v1645
        %vm1647 = vcmask 1040384
        %v1648 = vsel %vm1647, %v1633, %v1640
        %v1649 = vsel %vm1647, %v1634, %v1646
        %v1650 = vld [vmem:[%s8] sm:$0x1]
        %v1651 = vpack.c.bf16 %v1649, %v1648
        %v1653 = vunpack.c.l.b16 %v1651
        %v1654 = vunpack.c.h.b16 %v1651
        %v1655 = vpack.c.b16 %v1653, %v1653
        %v1656 = vpack.c.b16 %v1654, %v1654
        %1657 = vrot.lane.b32.xlu0 %v1655, 51
        %v1658 = vpop.permute.xlu0 %1657
        %1659 = vrot.lane.b32.xlu0 %v1656, 51
        %v1660 = vpop.permute.xlu0 %1659
        %v1661 = vsel %vm557, %v1658, %v1660
        %v1663 = vsel %vm559, 0, %v1658
        %v1665 = vsel %vm559, %v1660, 0
        %v1668 = vrot.slane %v1663, 7
        %v1669 = vrot.slane %v1661, 7
        %v1670 = vrot.slane %v1665, 7
        %1671 = vrot.lane.b32.xlu0 %v1668, 112
        %v1672 = vpop.permute.xlu0 %1671
        %1673 = vrot.lane.b32.xlu0 %v1669, 112
        %v1674 = vpop.permute.xlu0 %1673
        %1675 = vrot.lane.b32.xlu0 %v1670, 112
        %v1676 = vpop.permute.xlu0 %1675
        %v1677 = vsel %vm576, %v1672, %v1674
        %v1678 = vsel %vm576, %v1674, %v1676
        %v1679 = vrot.slane %v1663, 6
        %v1680 = vrot.slane %v1661, 6
        %v1681 = vrot.slane %v1665, 6
        %1682 = vrot.lane.b32.xlu0 %v1679, 96
        %v1683 = vpop.permute.xlu0 %1682
        %1684 = vrot.lane.b32.xlu0 %v1680, 96
        %v1685 = vpop.permute.xlu0 %1684
        %1686 = vrot.lane.b32.xlu0 %v1681, 96
        %v1687 = vpop.permute.xlu0 %1686
        %v1688 = vsel %vm585, %v1683, %v1685
        %v1689 = vsel %vm585, %v1685, %v1687
        %v1690 = vrot.slane %v1663, 5
        %v1691 = vrot.slane %v1661, 5
        %v1692 = vrot.slane %v1665, 5
        %1693 = vrot.lane.b32.xlu0 %v1690, 80
        %v1694 = vpop.permute.xlu0 %1693
        %1695 = vrot.lane.b32.xlu0 %v1691, 80
        %v1696 = vpop.permute.xlu0 %1695
        %1697 = vrot.lane.b32.xlu0 %v1692, 80
        %v1698 = vpop.permute.xlu0 %1697
        %v1699 = vsel %vm594, %v1694, %v1696
        %v1700 = vsel %vm594, %v1696, %v1698
        %v1701 = vrot.slane %v1663, 4
        %v1702 = vrot.slane %v1661, 4
        %v1703 = vrot.slane %v1665, 4
        %1704 = vrot.lane.b32.xlu0 %v1701, 64
        %v1705 = vpop.permute.xlu0 %1704
        %1706 = vrot.lane.b32.xlu0 %v1702, 64
        %v1707 = vpop.permute.xlu0 %1706
        %1708 = vrot.lane.b32.xlu0 %v1703, 64
        %v1709 = vpop.permute.xlu0 %1708
        %v1710 = vsel %vm603, %v1705, %v1707
        %v1711 = vsel %vm603, %v1707, %v1709
        %v1712 = vrot.slane %v1663, 3
        %v1713 = vrot.slane %v1661, 3
        %v1714 = vrot.slane %v1665, 3
        %1715 = vrot.lane.b32.xlu0 %v1712, 48
        %v1716 = vpop.permute.xlu0 %1715
        %1717 = vrot.lane.b32.xlu0 %v1713, 48
        %v1718 = vpop.permute.xlu0 %1717
        %1719 = vrot.lane.b32.xlu0 %v1714, 48
        %v1720 = vpop.permute.xlu0 %1719
        %v1721 = vsel %vm612, %v1716, %v1718
        %v1722 = vsel %vm612, %v1718, %v1720
        %v1723 = vrot.slane %v1663, 2
        %v1724 = vrot.slane %v1661, 2
        %v1725 = vrot.slane %v1665, 2
        %1726 = vrot.lane.b32.xlu0 %v1723, 32
        %v1727 = vpop.permute.xlu0 %1726
        %1728 = vrot.lane.b32.xlu0 %v1724, 32
        %v1729 = vpop.permute.xlu0 %1728
        %1730 = vrot.lane.b32.xlu0 %v1725, 32
        %v1731 = vpop.permute.xlu0 %1730
        %v1732 = vsel %vm621, %v1727, %v1729
        %v1733 = vsel %vm621, %v1729, %v1731
        %v1735 = vsel %vm1647, %v1663, %v1677
        %v1738 = vsel %vm1647, %v1661, %v1678
        %v1740 = vsel %vm505, %v1735, %v1688
        %v1742 = vsel %vm505, %v1738, %v1689
        %vm1743 = vcmask 1042432
        %v1745 = vsel %vm1743, %v1740, %v1699
        %v1747 = vsel %vm1743, %v1742, %v1700
        %v1749 = vsel %vm626, %v1745, %v1710
        %v1751 = vsel %vm626, %v1747, %v1711
        %vm1752 = vcmask 1044480
        %v1754 = vsel %vm1752, %v1749, %v1721
        %v1756 = vsel %vm1752, %v1751, %v1722
        %vm1757 = vcmask 1045504
        %v1759 = vsel %vm1757, %v1754, %v1732
        %v1762 = vsel %vm1757, %v1756, %v1733
        %v1764 = vunpack.c.l.bf16 %v1759
        %v1765 = vunpack.c.l.bf16 %v1762
        %v1766 = vunpack.c.h.bf16 %v1759
        %v1767 = vunpack.c.h.bf16 %v1762
        %v1768 = vmul.f32 %v1764, %v677
        %v1769 = vmul.f32 %v1765, %v678
        %v1770 = vmul.f32 %v1766, %v677
        %v1771 = vmul.f32 %v1767, %v678
        %v1772 = vpack.c.bf16 %v1770, %v1768
        %v1773 = vpack.c.bf16 %v1771, %v1769
        %v1775 = vsel %vm1647, %v1665, %v1676
        %v1777 = vsel %vm505, %v1775, %v1687
        %v1779 = vsel %vm1743, %v1777, %v1698
        %v1781 = vsel %vm626, %v1779, %v1709
        %v1783 = vsel %vm1752, %v1781, %v1720
        %v1785 = vsel %vm1757, %v1783, %v1731
        %v1787 = vunpack.c.l.bf16 %v1785
        %v1788 = vunpack.c.h.bf16 %v1785
        %v1789 = vmul.f32 %v1764, %v733
        %v1790 = vmul.f32 %v1765, %v736
        %v1791 = vmul.f32 %v1787, %v735
        %v1792 = vmul.f32 %v1766, %v733
        %v1793 = vmul.f32 %v1767, %v736
        %v1794 = vmul.f32 %v1788, %v735
        %v1795 = vpack.c.bf16 %v1792, %v1789
        %v1796 = vpack.c.bf16 %v1793, %v1790
        %v1797 = vpack.c.bf16 %v1794, %v1791
        %1799 = vst [vmem:[#allocation1] ss:$9 sm:$0xff] %v1650
        %v1800 = vld [vmem:[#allocation1] sm:$0xff]
        %1802 = vrot.lane.b32.xlu0 %v1800, 114
        %v1803 = vpop.permute.xlu0 %1802
        %1807 = vrot.lane.b32.xlu0 %v1795, 127
        %v1808 = vpop.permute.xlu0 %1807
        %1809 = vrot.lane.b32.xlu0 %v1796, 127
        %v1810 = vpop.permute.xlu0 %1809
        %1811 = vrot.lane.b32.xlu0 %v1797, 127
        %v1812 = vpop.permute.xlu0 %1811
        %v1813 = vsel %vm814, %v1808, %v1810
        %v1814 = vsel %vm814, %v1810, %v1812
        %vm1815 = vcmask 113664
        %v1817 = vsel %vm1815, %v1803, 0
        %vm1819 = vcmask 1046528
        %v1821 = vsel %vm1819, %v1813, 0
        %v1824 = vsel %vm1819, %v1814, 0
        %1826 = vmatpush.bf16.msra.mxu0 0
        %1827 = vmatpush.bf16.msra.mxu0 0
        %1828 = vmatpush.bf16.msra.mxu0 0
        %1829 = vmatpush.bf16.msra.mxu0 0
        %1830 = vmatpush.bf16.msra.mxu0 0
        %1831 = vmatpush.bf16.msra.mxu0 0
        %1832 = vmatpush.bf16.msra.mxu0 0
        %1833 = vmatpush.bf16.msra.mxu0 %v1821
        %1834 = vmatmul.bf16.gmra.mxu0 %v1817
        %v1835 = vpop.f32.mrf.mxu0
        %v1836 = vadd.f32 0.0, %v1835
        %v1837 = vpop.f32.mrf.mxu0
        %1838 = vdwg.mxu0
        %1839 = vmatpush.bf16.msra.mxu0 0
        %1840 = vmatpush.bf16.msra.mxu0 0
        %1841 = vmatpush.bf16.msra.mxu0 0
        %1842 = vmatpush.bf16.msra.mxu0 0
        %1843 = vmatpush.bf16.msra.mxu0 0
        %1844 = vmatpush.bf16.msra.mxu0 0
        %1845 = vmatpush.bf16.msra.mxu0 0
        %1846 = vmatpush.bf16.msra.mxu0 %v1824
        %1847 = vmatmul.bf16.gmra.mxu0 %v1817
        %v1848 = vpop.f32.mrf.mxu0
        %v1849 = vadd.f32 0.0, %v1848
        %v1850 = vpop.f32.mrf.mxu0
        %1851 = vdwg.mxu0
        %v1852 = vsel %vm1815, %v1650, 0
        %v1855 = vsel %vm1819, %v1772, 0
        %v1858 = vsel %vm1819, %v1773, 0
        %1860 = vmatpush.bf16.msra.mxu0 0
        %1861 = vmatpush.bf16.msra.mxu0 0
        %1862 = vmatpush.bf16.msra.mxu0 0
        %1863 = vmatpush.bf16.msra.mxu0 0
        %1864 = vmatpush.bf16.msra.mxu0 0
        %1865 = vmatpush.bf16.msra.mxu0 0
        %1866 = vmatpush.bf16.msra.mxu0 0
        %1867 = vmatpush.bf16.msra.mxu0 %v1855
        %1868 = vmatmul.bf16.gmra.mxu0 %v1852
        %v1869 = vpop.f32.mrf.mxu0
        %v1870 = vadd.f32 %v1836, %v1869
        %v1871 = vpop.f32.mrf.mxu0
        %1872 = vdwg.mxu0
        %1873 = vmatpush.bf16.msra.mxu0 0
        %1874 = vmatpush.bf16.msra.mxu0 0
        %1875 = vmatpush.bf16.msra.mxu0 0
        %1876 = vmatpush.bf16.msra.mxu0 0
        %1877 = vmatpush.bf16.msra.mxu0 0
        %1878 = vmatpush.bf16.msra.mxu0 0
        %1879 = vmatpush.bf16.msra.mxu0 0
        %1880 = vmatpush.bf16.msra.mxu0 %v1858
        %1881 = vmatmul.bf16.gmra.mxu0 %v1852
        %v1882 = vpop.f32.mrf.mxu0
        %v1883 = vadd.f32 %v1849, %v1882
        %v1884 = vpop.f32.mrf.mxu0
        %1885 = vdwg.mxu0
        %v1886 = vmul.f32 %v1764, %v907
        %v1887 = vmul.f32 %v1765, %v910
        %v1888 = vmul.f32 %v1787, %v909
        %v1889 = vmul.f32 %v1766, %v907
        %v1890 = vmul.f32 %v1767, %v910
        %v1891 = vmul.f32 %v1788, %v909
        %v1892 = vpack.c.bf16 %v1889, %v1886
        %v1893 = vpack.c.bf16 %v1890, %v1887
        %v1894 = vpack.c.bf16 %v1891, %v1888
        %1895 = vst [vmem:[#allocation1] ss:$9 sm:$0xff] %v1650
        %v1896 = vld [vmem:[#allocation1] sm:$0xff]
        %1898 = vrot.lane.b32.xlu0 %v1896, 100
        %v1899 = vpop.permute.xlu0 %1898
        %1903 = vrot.lane.b32.xlu0 %v1892, 126
        %v1904 = vpop.permute.xlu0 %1903
        %1905 = vrot.lane.b32.xlu0 %v1893, 126
        %v1906 = vpop.permute.xlu0 %1905
        %1907 = vrot.lane.b32.xlu0 %v1894, 126
        %v1908 = vpop.permute.xlu0 %1907
        %v1909 = vsel %vm991, %v1904, %v1906
        %v1910 = vsel %vm991, %v1906, %v1908
        %v1912 = vsel %vm1815, %v1899, 0
        %v1915 = vsel %vm1819, %v1909, 0
        %v1918 = vsel %vm1819, %v1910, 0
        %1920 = vmatpush.bf16.msra.mxu0 0
        %1921 = vmatpush.bf16.msra.mxu0 0
        %1922 = vmatpush.bf16.msra.mxu0 0
        %1923 = vmatpush.bf16.msra.mxu0 0
        %1924 = vmatpush.bf16.msra.mxu0 0
        %1925 = vmatpush.bf16.msra.mxu0 0
        %1926 = vmatpush.bf16.msra.mxu0 0
        %1927 = vmatpush.bf16.msra.mxu0 %v1915
        %1928 = vmatmul.bf16.gmra.mxu0 %v1912
        %v1929 = vpop.f32.mrf.mxu0
        %v1930 = vadd.f32 0.0, %v1929
        %v1931 = vpop.f32.mrf.mxu0
        %1932 = vdwg.mxu0
        %1933 = vmatpush.bf16.msra.mxu0 0
        %1934 = vmatpush.bf16.msra.mxu0 0
        %1935 = vmatpush.bf16.msra.mxu0 0
        %1936 = vmatpush.bf16.msra.mxu0 0
        %1937 = vmatpush.bf16.msra.mxu0 0
        %1938 = vmatpush.bf16.msra.mxu0 0
        %1939 = vmatpush.bf16.msra.mxu0 0
        %1940 = vmatpush.bf16.msra.mxu0 %v1918
        %1941 = vmatmul.bf16.gmra.mxu0 %v1912
        %v1942 = vpop.f32.mrf.mxu0
        %v1943 = vadd.f32 0.0, %v1942
        %v1944 = vpop.f32.mrf.mxu0
        %1945 = vdwg.mxu0
        %v1946 = vadd.f32 %v1870, %v1930
        %v1947 = vadd.f32 %v1883, %v1943
        %v1948 = vmul.f32 %v1764, %v1050
        %v1949 = vmul.f32 %v1765, %v1054
        %v1950 = vmul.f32 %v1787, %v1052
        %v1951 = vmul.f32 %v1766, %v1050
        %v1952 = vmul.f32 %v1767, %v1054
        %v1953 = vmul.f32 %v1788, %v1052
        %v1954 = vpack.c.bf16 %v1951, %v1948
        %v1955 = vpack.c.bf16 %v1952, %v1949
        %v1956 = vpack.c.bf16 %v1953, %v1950
        %1957 = vst [vmem:[#allocation1] ss:$9 sm:$0xff] %v1650
        %v1958 = vld [vmem:[#allocation1] sm:$0xff]
        %1960 = vrot.lane.b32.xlu0 %v1958, 86
        %v1961 = vpop.permute.xlu0 %1960
        %1965 = vrot.lane.b32.xlu0 %v1954, 125
        %v1966 = vpop.permute.xlu0 %1965
        %1967 = vrot.lane.b32.xlu0 %v1955, 125
        %v1968 = vpop.permute.xlu0 %1967
        %1969 = vrot.lane.b32.xlu0 %v1956, 125
        %v1970 = vpop.permute.xlu0 %1969
        %v1971 = vsel %vm1129, %v1966, %v1968
        %v1972 = vsel %vm1129, %v1968, %v1970
        %v1974 = vsel %vm1815, %v1961, 0
        %v1977 = vsel %vm1819, %v1971, 0
        %v1980 = vsel %vm1819, %v1972, 0
        %1982 = vmatpush.bf16.msra.mxu0 0
        %1983 = vmatpush.bf16.msra.mxu0 0
        %1984 = vmatpush.bf16.msra.mxu0 0
        %1985 = vmatpush.bf16.msra.mxu0 0
        %1986 = vmatpush.bf16.msra.mxu0 0
        %1987 = vmatpush.bf16.msra.mxu0 0
        %1988 = vmatpush.bf16.msra.mxu0 0
        %1989 = vmatpush.bf16.msra.mxu0 %v1977
        %1990 = vmatmul.bf16.gmra.mxu0 %v1974
        %v1991 = vpop.f32.mrf.mxu0
        %v1992 = vadd.f32 0.0, %v1991
        %v1993 = vpop.f32.mrf.mxu0
        %1994 = vdwg.mxu0
        %1995 = vmatpush.bf16.msra.mxu0 0
        %1996 = vmatpush.bf16.msra.mxu0 0
        %1997 = vmatpush.bf16.msra.mxu0 0
        %1998 = vmatpush.bf16.msra.mxu0 0
        %1999 = vmatpush.bf16.msra.mxu0 0
        %2000 = vmatpush.bf16.msra.mxu0 0
        %2001 = vmatpush.bf16.msra.mxu0 0
        %2002 = vmatpush.bf16.msra.mxu0 %v1980
        %2003 = vmatmul.bf16.gmra.mxu0 %v1974
        %v2004 = vpop.f32.mrf.mxu0
        %v2005 = vadd.f32 0.0, %v2004
        %v2006 = vpop.f32.mrf.mxu0
        %2007 = vdwg.mxu0
        %v2008 = vadd.f32 %v1946, %v1992
        %v2009 = vadd.f32 %v1947, %v2005
        %v2010 = vmul.f32 %v1764, %v1188
        %v2011 = vmul.f32 %v1765, %v1192
        %v2012 = vmul.f32 %v1787, %v1190
        %v2013 = vmul.f32 %v1766, %v1188
        %v2014 = vmul.f32 %v1767, %v1192
        %v2015 = vmul.f32 %v1788, %v1190
        %v2016 = vpack.c.bf16 %v2013, %v2010
        %v2017 = vpack.c.bf16 %v2014, %v2011
        %v2018 = vpack.c.bf16 %v2015, %v2012
        %2019 = vst [vmem:[#allocation1] ss:$9 sm:$0xff] %v1650
        %v2020 = vld [vmem:[#allocation1] sm:$0xff]
        %2022 = vrot.lane.b32.xlu0 %v2020, 72
        %v2023 = vpop.permute.xlu0 %2022
        %2027 = vrot.lane.b32.xlu0 %v2016, 124
        %v2028 = vpop.permute.xlu0 %2027
        %2029 = vrot.lane.b32.xlu0 %v2017, 124
        %v2030 = vpop.permute.xlu0 %2029
        %2031 = vrot.lane.b32.xlu0 %v2018, 124
        %v2032 = vpop.permute.xlu0 %2031
        %v2033 = vsel %vm1273, %v2028, %v2030
        %v2034 = vsel %vm1273, %v2030, %v2032
        %v2036 = vsel %vm1815, %v2023, 0
        %v2039 = vsel %vm1819, %v2033, 0
        %v2042 = vsel %vm1819, %v2034, 0
        %2044 = vmatpush.bf16.msra.mxu0 0
        %2045 = vmatpush.bf16.msra.mxu0 0
        %2046 = vmatpush.bf16.msra.mxu0 0
        %2047 = vmatpush.bf16.msra.mxu0 0
        %2048 = vmatpush.bf16.msra.mxu0 0
        %2049 = vmatpush.bf16.msra.mxu0 0
        %2050 = vmatpush.bf16.msra.mxu0 0
        %2051 = vmatpush.bf16.msra.mxu0 %v2039
        %2052 = vmatmul.bf16.gmra.mxu0 %v2036
        %v2053 = vpop.f32.mrf.mxu0
        %v2054 = vadd.f32 0.0, %v2053
        %v2055 = vpop.f32.mrf.mxu0
        %2056 = vdwg.mxu0
        %2057 = vmatpush.bf16.msra.mxu0 0
        %2058 = vmatpush.bf16.msra.mxu0 0
        %2059 = vmatpush.bf16.msra.mxu0 0
        %2060 = vmatpush.bf16.msra.mxu0 0
        %2061 = vmatpush.bf16.msra.mxu0 0
        %2062 = vmatpush.bf16.msra.mxu0 0
        %2063 = vmatpush.bf16.msra.mxu0 0
        %2064 = vmatpush.bf16.msra.mxu0 %v2042
        %2065 = vmatmul.bf16.gmra.mxu0 %v2036
        %v2066 = vpop.f32.mrf.mxu0
        %v2067 = vadd.f32 0.0, %v2066
        %v2068 = vpop.f32.mrf.mxu0
        %2069 = vdwg.mxu0
        %v2070 = vadd.f32 %v2008, %v2054
        %v2071 = vadd.f32 %v2009, %v2067
        %v2072 = vmul.f32 %v1764, %v1332
        %v2073 = vmul.f32 %v1765, %v1336
        %v2074 = vmul.f32 %v1787, %v1334
        %v2075 = vmul.f32 %v1766, %v1332
        %v2076 = vmul.f32 %v1767, %v1336
        %v2077 = vmul.f32 %v1788, %v1334
        %v2078 = vpack.c.bf16 %v2075, %v2072
        %v2079 = vpack.c.bf16 %v2076, %v2073
        %v2080 = vpack.c.bf16 %v2077, %v2074
        %2081 = vst [vmem:[#allocation1] ss:$9 sm:$0xff] %v1650
        %v2082 = vld [vmem:[#allocation1] sm:$0xff]
        %2084 = vrot.lane.b32.xlu0 %v2082, 58
        %v2085 = vpop.permute.xlu0 %2084
        %2089 = vrot.lane.b32.xlu0 %v2078, 123
        %v2090 = vpop.permute.xlu0 %2089
        %2091 = vrot.lane.b32.xlu0 %v2079, 123
        %v2092 = vpop.permute.xlu0 %2091
        %2093 = vrot.lane.b32.xlu0 %v2080, 123
        %v2094 = vpop.permute.xlu0 %2093
        %v2095 = vsel %vm1411, %v2090, %v2092
        %v2096 = vsel %vm1411, %v2092, %v2094
        %v2098 = vsel %vm1815, %v2085, 0
        %v2101 = vsel %vm1819, %v2095, 0
        %v2104 = vsel %vm1819, %v2096, 0
        %2106 = vmatpush.bf16.msra.mxu0 0
        %2107 = vmatpush.bf16.msra.mxu0 0
        %2108 = vmatpush.bf16.msra.mxu0 0
        %2109 = vmatpush.bf16.msra.mxu0 0
        %2110 = vmatpush.bf16.msra.mxu0 0
        %2111 = vmatpush.bf16.msra.mxu0 0
        %2112 = vmatpush.bf16.msra.mxu0 0
        %2113 = vmatpush.bf16.msra.mxu0 %v2101
        %2114 = vmatmul.bf16.gmra.mxu0 %v2098
        %v2115 = vpop.f32.mrf.mxu0
        %v2116 = vadd.f32 0.0, %v2115
        %v2117 = vpop.f32.mrf.mxu0
        %2118 = vdwg.mxu0
        %2119 = vmatpush.bf16.msra.mxu0 0
        %2120 = vmatpush.bf16.msra.mxu0 0
        %2121 = vmatpush.bf16.msra.mxu0 0
        %2122 = vmatpush.bf16.msra.mxu0 0
        %2123 = vmatpush.bf16.msra.mxu0 0
        %2124 = vmatpush.bf16.msra.mxu0 0
        %2125 = vmatpush.bf16.msra.mxu0 0
        %2126 = vmatpush.bf16.msra.mxu0 %v2104
        %2127 = vmatmul.bf16.gmra.mxu0 %v2098
        %v2128 = vpop.f32.mrf.mxu0
        %v2129 = vadd.f32 0.0, %v2128
        %v2130 = vpop.f32.mrf.mxu0
        %2131 = vdwg.mxu0
        %v2132 = vadd.f32 %v2070, %v2116
        %v2133 = vadd.f32 %v2071, %v2129
        %v2134 = vmul.f32 %v1764, %v1470
        %v2135 = vmul.f32 %v1765, %v1474
        %v2136 = vmul.f32 %v1787, %v1472
        %v2137 = vmul.f32 %v1766, %v1470
        %v2138 = vmul.f32 %v1767, %v1474
        %v2139 = vmul.f32 %v1788, %v1472
        %v2140 = vpack.c.bf16 %v2137, %v2134
        %v2141 = vpack.c.bf16 %v2138, %v2135
        %v2142 = vpack.c.bf16 %v2139, %v2136
        %2143 = vst [vmem:[#allocation1] ss:$9 sm:$0xff] %v1650
        %v2144 = vld [vmem:[#allocation1] sm:$0xff]
        %2146 = vrot.lane.b32.xlu0 %v2144, 44
        %v2147 = vpop.permute.xlu0 %2146
        %2151 = vrot.lane.b32.xlu0 %v2140, 122
        %v2152 = vpop.permute.xlu0 %2151
        %2153 = vrot.lane.b32.xlu0 %v2141, 122
        %v2154 = vpop.permute.xlu0 %2153
        %2155 = vrot.lane.b32.xlu0 %v2142, 122
        %v2156 = vpop.permute.xlu0 %2155
        %v2157 = vsel %vm1554, %v2152, %v2154
        %v2158 = vsel %vm1554, %v2154, %v2156
        %v2160 = vsel %vm1815, %v2147, 0
        %v2163 = vsel %vm1819, %v2157, 0
        %v2166 = vsel %vm1819, %v2158, 0
        %2168 = vmatpush.bf16.msra.mxu0 0
        %2169 = vmatpush.bf16.msra.mxu0 0
        %2170 = vmatpush.bf16.msra.mxu0 0
        %2171 = vmatpush.bf16.msra.mxu0 0
        %2172 = vmatpush.bf16.msra.mxu0 0
        %2173 = vmatpush.bf16.msra.mxu0 0
        %2174 = vmatpush.bf16.msra.mxu0 0
        %2175 = vmatpush.bf16.msra.mxu0 %v2163
        %2176 = vmatmul.bf16.gmra.mxu0 %v2160
        %v2177 = vpop.f32.mrf.mxu0
        %v2178 = vadd.f32 0.0, %v2177
        %v2179 = vpop.f32.mrf.mxu0
        %2180 = vdwg.mxu0
        %2181 = vmatpush.bf16.msra.mxu0 0
        %2182 = vmatpush.bf16.msra.mxu0 0
        %2183 = vmatpush.bf16.msra.mxu0 0
        %2184 = vmatpush.bf16.msra.mxu0 0
        %2185 = vmatpush.bf16.msra.mxu0 0
        %2186 = vmatpush.bf16.msra.mxu0 0
        %2187 = vmatpush.bf16.msra.mxu0 0
        %2188 = vmatpush.bf16.msra.mxu0 %v2166
        %2189 = vmatmul.bf16.gmra.mxu0 %v2160
        %v2190 = vpop.f32.mrf.mxu0
        %v2191 = vadd.f32 0.0, %v2190
        %v2192 = vpop.f32.mrf.mxu0
        %2193 = vdwg.mxu0
        %v2194 = vadd.f32 %v2132, %v2178
        %v2195 = vadd.f32 %v2133, %v2191
        %v2196 = vmul.f32 %v2194, 0.5
        %v2197 = vmul.f32 %v2195, 0.5
        %v2198 = vtanh.pop %v2196
        %v2199 = vtanh.pop %v2197
        %v2200 = vmul.f32 %v2198, 0.5
        %v2201 = vmul.f32 %v2199, 0.5
        %v2202 = vadd.f32 %v2200, 0.5
        %v2203 = vadd.f32 %v2201, 0.5
        %v2204 = vperm.slane %v2202, 0
        %v2205 = vperm.slane %v2203, 0
        %v2206 = vmul.f32 %v1612, %v2204
        %v2207 = vmul.f32 %v1613, %v2205
        %v2208 = vadd.f32 %v2206, %v543
        %v2209 = vadd.f32 %v2207, %v544
        %v2210 = vld [vmem:[%s9] sm:$0xf]
        %v2211 = vld [vmem:[%s9 + $0x4] sm:$0xf]
        %v2212 = vld [vmem:[%s9 + $0x8] sm:$0xf]
        %v2213 = vld [vmem:[%s9 + $0xc] sm:$0xf]
        %v2214 = vpack.c.bf16 %v2208, %v2208
        %v2215 = vpack.c.bf16 %v2209, %v2209
        %v2216 = vld [vmem:[%s10] sm:$0xff]
        %v2217 = vld [vmem:[%s10 + $0x8] sm:$0xff]
        %v2218 = vld [vmem:[%s10 + $0x10] sm:$0xff]
        %v2219 = vld [vmem:[%s10 + $0x18] sm:$0xff]
        %2221 = vset.pattern.permute.xlu0 0
        %2222 = vperm.xlu0 %2221, %v2216
        %v2223 = vpop.permute.xlu0 %2222
        %2226 = vset.pattern.permute.xlu0 0
        %2227 = vperm.xlu0 %2226, %v2217
        %v2228 = vpop.permute.xlu0 %2227
        %2231 = vset.pattern.permute.xlu0 0
        %2232 = vperm.xlu0 %2231, %v2218
        %v2233 = vpop.permute.xlu0 %2232
        %2236 = vset.pattern.permute.xlu0 0
        %2237 = vperm.xlu0 %2236, %v2219
        %v2238 = vpop.permute.xlu0 %2237
        %v2244 = vunpack.c.l.b16 %v2210
        %v2245 = vunpack.c.l.b16 %v2211
        %v2246 = vunpack.c.l.b16 %v2212
        %v2247 = vunpack.c.l.b16 %v2213
        %v2248 = vpack.c.b16 %v2245, %v2244
        %v2249 = vpack.c.b16 %v2247, %v2246
        %v2251 = vsel %vm475, %v2248, 0
        %v2254 = vsel %vm475, %v2249, 0
        %v2257 = vsel %vm626, %v2214, 0
        %v2260 = vsel %vm626, %v2215, 0
        %2262 = vmatpush.bf16.msra.mxu0 0
        %2263 = vmatpush.bf16.msra.mxu0 0
        %2264 = vmatpush.bf16.msra.mxu0 0
        %2265 = vmatpush.bf16.msra.mxu0 0
        %2266 = vmatpush.bf16.msra.mxu0 0
        %2267 = vmatpush.bf16.msra.mxu0 0
        %2268 = vmatpush.bf16.msra.mxu0 0
        %2269 = vmatpush.bf16.msra.mxu0 %v2257
        %2270 = vmatmul.bf16.gmra.mxu0 %v2251
        %v2271 = vpop.f32.mrf.mxu0
        %v2272 = vadd.f32 %v2223, %v2271
        %v2273 = vpop.f32.mrf.mxu0
        %v2274 = vadd.f32 %v2228, %v2273
        %2275 = vmatmul.bf16.gmra.mxu0 %v2254
        %v2276 = vpop.f32.mrf.mxu0
        %v2277 = vadd.f32 %v2233, %v2276
        %v2278 = vpop.f32.mrf.mxu0
        %v2279 = vadd.f32 %v2238, %v2278
        %2280 = vdwg.mxu0
        %2281 = vmatpush.bf16.msra.mxu0 0
        %2282 = vmatpush.bf16.msra.mxu0 0
        %2283 = vmatpush.bf16.msra.mxu0 0
        %2284 = vmatpush.bf16.msra.mxu0 0
        %2285 = vmatpush.bf16.msra.mxu0 0
        %2286 = vmatpush.bf16.msra.mxu0 0
        %2287 = vmatpush.bf16.msra.mxu0 0
        %2288 = vmatpush.bf16.msra.mxu0 %v2260
        %2289 = vmatmul.bf16.gmra.mxu0 %v2251
        %v2290 = vpop.f32.mrf.mxu0
        %v2291 = vadd.f32 %v2223, %v2290
        %v2292 = vpop.f32.mrf.mxu0
        %v2293 = vadd.f32 %v2228, %v2292
        %2294 = vmatmul.bf16.gmra.mxu0 %v2254
        %v2295 = vpop.f32.mrf.mxu0
        %v2296 = vadd.f32 %v2233, %v2295
        %v2297 = vpop.f32.mrf.mxu0
        %v2298 = vadd.f32 %v2238, %v2297
        %2299 = vdwg.mxu0
        %2300 = vst [vmem:[%s406] sm:$0xff] %v2272
        %2301 = vst [vmem:[%s406 + $0x8] sm:$0xff] %v2291
        %2302 = vst [vmem:[%s406 + $0x10] sm:$0xff] %v2274
        %2303 = vst [vmem:[%s406 + $0x18] sm:$0xff] %v2293
        %2304 = vst [vmem:[%s406 + $0x20] sm:$0xff] %v2277
        %2305 = vst [vmem:[%s406 + $0x28] sm:$0xff] %v2296
        %2306 = vst [vmem:[%s406 + $0x30] sm:$0xff] %v2279
        %2307 = vst [vmem:[%s406 + $0x38] sm:$0xff] %v2298
        %s2308 = sand.u32 %s272, 1
        %s2309 = scalar_lea.sflag [#allocation4], %s2308
        %s2310 = sand.u32 %s272, 1
        %s2311 = smul.addr %s2310, 64
        %s2312 = scalar_lea.vmem [#allocation5], %s2311
        // Predicated region
        $region69: #{tpu_custom_call.1} parent=63 // pred_check
          %p2313 = pneg %p282
        $region70: #{tpu_custom_call.1} parent=63 // pred_check_branch
          %2315 = sbr.rel (%p2313) target = $region72
        $region71: #{tpu_custom_call.1} parent=63 // pred_region
          %2317 = vsyncadd %s2309, 0
          %s2318 = smul.addr %s28, 8
          %s2319 = smul.addr %s2318, 8
          %s2320 = scalar_lea.hbm %s11, %s2319
          %s2321 = sshll.u32 %s2312, 4
          %s2322 = int_to_ptr.vmem [resolvable:$true] %s2321
          %s2323 = sshll.u32 %s2320, 4
          %s2324 = int_to_ptr.hbm [resolvable:$true] %s2323
          %2329 = dma.vmem_to_hbm [thread:$0]  %s2322, 1024, %s2324, %s2309, 256, 256, 16
        $region72: #{tpu_custom_call.1} parent=63 // pred_fallthru
          _
      $region64: #{tpu_custom_call.1} parent=5 // pred_fallthru
        _
      %p2330 = scmp.le.s32.totalorder 2, %s23
      // Predicated region
      $region73: #{tpu_custom_call.1} parent=5 // pred_check
        %p2331 = pneg %p2330
      $region74: #{tpu_custom_call.1} parent=5 // pred_check_branch
        %2333 = sbr.rel (%p2331) target = $region76
      $region75: #{tpu_custom_call.1} parent=5 // pred_region
        %s2334 = ssub.s32 %s23, 2
        // Predicated region
        $region77: #{tpu_custom_call.1} parent=75 // pred_check
          %p2335 = pneg %p288
        $region78: #{tpu_custom_call.1} parent=75 // pred_check_branch
          %2337 = sbr.rel (%p2335) target = $region80
        $region79: #{tpu_custom_call.1} parent=75 // pred_region
          %s2338 = sand.u32 %s273, 1
          %s2339 = scalar_lea.sflag [#allocation4], %s2338
          %s2340 = sand.u32 %s273, 1
          %s2341 = smul.addr %s2340, 64
          %s2342 = scalar_lea.vmem [#allocation5], %s2341
          %2344 = dma.done %s2339, 1024
        $region80: #{tpu_custom_call.1} parent=75 // pred_fallthru
          _
      $region76: #{tpu_custom_call.1} parent=5 // pred_fallthru
        _
    $region6: #{tpu_custom_call.1} parent=1 // loop_footer
      %s27 = sadd.s32 1, %s23
    $region7: #{tpu_custom_call.1} parent=1 // loop_footer_branch
      %22 = sbr.rel target = $region3
    $region8: #{tpu_custom_call.1} parent=1 // loop_exit
      _
    %2345 = vsyncpa [#allocation3], 1
    %s2346 = scalar_lea.sflag [#allocation3], 1
    %2347 = vsyncpa %s2346, 1
    %2348 = vsyncpa [#allocation4], 1
    %s2349 = scalar_lea.sflag [#allocation4], 1
    %2350 = vsyncpa %s2349, 1

</llo_original>
